<compile_context>
chip_gen: v7x
topology: tpu7x:2x2x1
jax: 0.10.0
libtpu: 0.0.40
codegen_flags: <defaults>
</compile_context>

<pallas_src>
import jax
import jax.numpy as jnp
import numpy as np
from jax.experimental import pallas as pl
from jax.experimental.pallas import tpu as pltpu

EPS = 1e-5


def _ln_rows(v, w, b):
    """LayerNorm of each row of v:(TB, N) over all N elements, elementwise affine (1, N)."""
    inv_n = 1.0 / v.shape[1]
    mu = jnp.sum(v, axis=1, keepdims=True) * inv_n
    d = v - mu
    var = jnp.sum(d * d, axis=1, keepdims=True) * inv_n
    return d * jax.lax.rsqrt(var + EPS) * w + b


def _fusion_kernel(x_ref, wpc_ref, p100_ref, fc1_ref, sc_ref, p16_ref,
                   fc2_ref, fc3_ref, out_ref):
    x = x_ref[...].astype(jnp.float32)  # (TB, HW*C)   lane-dense input slab (f32 or bf16 stream)
    p100 = p100_ref[...]                # (5, HW*5):   [pc_bias, ln1_w, ln1_b, lns_w, lns_b]
    p16 = p16_ref[...]                  # (4, 16):     [ln2_w, ln2_b, ln3_w|pad0, ln3_b|pad0]

    # patch_classifier (1x1 conv over C channels at every spatial position) as ONE matmul
    # with a block-diagonal weight -> output already in lane-dense (TB, HW*5) layout.
    xin = jnp.dot(x, wpc_ref[...], preferred_element_type=jnp.float32) + p100[0:1, :]

    # ---- shared LayerNorm statistics (ln1_final and ln_shortcut_final normalize the SAME
    # xin; only the elementwise affine differs) -> compute mean/var/rsqrt once. ----
    inv_n = 1.0 / xin.shape[1]
    mu = jnp.sum(xin, axis=1, keepdims=True) * inv_n
    d = xin - mu
    var = jnp.sum(d * d, axis=1, keepdims=True) * inv_n
    nrm = d * jax.lax.rsqrt(var + EPS)                                        # (TB, HW*5)

    # ---- main branch ----
    h = jnp.maximum(nrm * p100[1:2, :] + p100[2:3, :], 0.0)                   # relu(ln1(xin))
    y = jnp.dot(h, fc1_ref[...], preferred_element_type=jnp.float32)          # (TB, 16)
    y = jnp.maximum(_ln_rows(y, p16[0:1, :], p16[1:2, :]), 0.0)
    y = jnp.dot(y, fc2_ref[...], preferred_element_type=jnp.float32)          # (TB, 8)
    y = jnp.maximum(_ln_rows(y, p16[2:3, 0:8], p16[3:4, 0:8]), 0.0)
    y = jnp.dot(y, fc3_ref[...], preferred_element_type=jnp.float32)          # (TB, 2)

    # ---- shortcut branch (reuses nrm) ----
    s = nrm * p100[3:4, :] + p100[4:5, :]                                     # ln_shortcut(xin)
    s = jnp.dot(s, sc_ref[...], preferred_element_type=jnp.float32)           # (TB, 2)

    out_ref[...] = (y + s).astype(out_ref.dtype)                              # batched store


def _round_up(n, m):
    return ((n + m - 1) // m) * m


def _pick_tb(B, hw_c, hw5, tb_desired, in_bytes_per_elem, vmem_budget_bytes=12 << 20):
    """Pick the per-step batch tile.

    Caps tb by a conservative VMEM budget (double-buffered x block plus ~6 live (tb, HW*5)
    f32 temporaries), and forces nb = ceil(B/tb) >= 2 so the 'parallel' grid axis can be
    sharded across both v7x TensorCores.  On v5e/v6e (1 TC) the nb>=2 clamp only applies
    for small B, where step overhead is negligible anyway.
    """
    per_sample = 2 * hw_c * in_bytes_per_elem + 6 * hw5 * 4
    tb_fit = max(8, (vmem_budget_bytes // max(per_sample, 1)) // 8 * 8)
    tb = min(tb_desired, tb_fit)
    tb = min(tb, _round_up(pl.cdiv(B, 2), 8))   # >= 2 grid steps (v7x megacore)
    return max(tb, 8)


def nikulin_fusion_forward(x_nhwc, kp, tb=1024, use_bf16_input=False):
    """x_nhwc: (B, KY, KX, C) float32.  kp: kernel-layout params.  Returns (B, 2) float32.

    tb is the *desired* samples per grid step (multiple of 8); the actual tile is picked
    adaptively so that (a) the double-buffered x block + temporaries stay within a ~12 MiB
    VMEM budget (safe under v5e's 16 MiB scoped default and v7x's 32 MiB / 64 MiB), and
    (b) there are >= 2 grid steps so both v7x TensorCores get work.  For production
    batches this lands at tb in the 512-1024 range, amortizing the ~0.35 us per-step
    pipeline overhead and giving the (tb, HW*C)@(HW*C, HW*5) matmul a full-height M.

    use_bf16_input=True streams x as bf16 (accumulation / LN stay f32) — halves the
    HBM-bound input read on v5e/v6e at a small accuracy cost; off by default.
    """
    assert tb % 8 == 0
    B, H, W, C = x_nhwc.shape
    HW = H * W
    hw5 = HW * 5
    hw_c = HW * C

    in_dtype = jnp.bfloat16 if use_bf16_input else jnp.float32
    x2 = x_nhwc.reshape(B, hw_c).astype(in_dtype)          # lane-dense, matches wpc_big layout

    tb = _pick_tb(B, hw_c, hw5, tb, in_bytes_per_elem=x2.dtype.itemsize)
    nb = pl.cdiv(B, tb)
    Bp = nb * tb
    if Bp != B:                                            # pad batch to a multiple of tb
        x2 = jnp.pad(x2, ((0, Bp - B), (0, 0)))

    weight_bytes = sum(int(np.prod(kp[k].shape)) * 4 for k in
                       ("wpc_big", "p100", "fc1_w", "sc_w", "p16", "fc2_w", "fc3_w"))
    # flops: only the *useful* MACs (the block-diagonal zero padding is not counted).
    flops_per_sample = (HW * 5 * C * 2          # 1x1 patch classifier
                        + hw5 * 16 * 2          # fc1_final
                        + hw5 * 2 * 2           # shortcut_final
                        + 16 * 8 * 2 + 8 * 2 * 2)
    cost = pl.CostEstimate(
        flops=int(B * flops_per_sample),
        transcendentals=int(B * 3),             # 3 rsqrt per sample (shared xin stats)
        bytes_accessed=int(B * (hw_c * x2.dtype.itemsize + 8) + weight_bytes),
    )

    def _const(shape):                                     # grid-constant (resident) operand
        return pl.BlockSpec(shape, lambda b: (0,) * len(shape))

    out = pl.pallas_call(
        _fusion_kernel,
        out_shape=jax.ShapeDtypeStruct((Bp, 2), jnp.float32),
        grid=(nb,),
        in_specs=[
            pl.BlockSpec((tb, hw_c), lambda b: (b, 0)),    # x: TB samples per step
            _const(kp["wpc_big"].shape),                   # (HW*C, HW*5) block-diag 1x1 conv
            _const(kp["p100"].shape),                      # (5, HW*5) packed bias + LN affines
            _const(kp["fc1_w"].shape),                     # (HW*5, 16)
            _const(kp["sc_w"].shape),                      # (HW*5, 2)
            _const(kp["p16"].shape),                       # (4, 16) packed LN2/LN3 affines
            _const(kp["fc2_w"].shape),                     # (16, 8)
            _const(kp["fc3_w"].shape),                     # (8, 2)
        ],
        out_specs=pl.BlockSpec((tb, 2), lambda b: (b, 0)),
        compiler_params=pltpu.CompilerParams(dimension_semantics=("parallel",)),
        cost_estimate=cost,
    )(x2, kp["wpc_big"], kp["p100"], kp["fc1_w"], kp["sc_w"], kp["p16"],
      kp["fc2_w"], kp["fc3_w"])
    return out[:B]


# ------------------- parameter setup (torch layouts -> packed kernel layouts) -------------------
def make_params(C, KY, KX, key):
    ks = jax.random.split(key, 16)
    f32 = jnp.float32
    tp = {  # torch-layout parameters
        "pc_w":  (0.1 * jax.random.normal(ks[0], (5, C))).astype(f32),           # Conv2d(C,5,1)
        "pc_b":  (0.1 * jax.random.normal(ks[1], (5,))).astype(f32),
        "ln1_w": (1.0 + 0.1 * jax.random.normal(ks[2], (5, KY, KX))).astype(f32),
        "ln1_b": (0.1 * jax.random.normal(ks[3], (5, KY, KX))).astype(f32),
        "fc1_w": (0.1 * jax.random.normal(ks[4], (16, 5, KY, KX))).astype(f32),  # Conv2d(5,16,(KY,KX))
        "ln2_w": (1.0 + 0.1 * jax.random.normal(ks[5], (16,))).astype(f32),
        "ln2_b": (0.1 * jax.random.normal(ks[6], (16,))).astype(f32),
        "fc2_w": (0.1 * jax.random.normal(ks[7], (8, 16))).astype(f32),          # Conv2d(16,8,1)
        "ln3_w": (1.0 + 0.1 * jax.random.normal(ks[8], (8,))).astype(f32),
        "ln3_b": (0.1 * jax.random.normal(ks[9], (8,))).astype(f32),
        "fc3_w": (0.1 * jax.random.normal(ks[10], (2, 8))).astype(f32),          # Conv2d(8,2,1)
        "lns_w": (1.0 + 0.1 * jax.random.normal(ks[11], (5, KY, KX))).astype(f32),
        "lns_b": (0.1 * jax.random.normal(ks[12], (5, KY, KX))).astype(f32),
        "sc_w":  (0.1 * jax.random.normal(ks[13], (2, 5, KY, KX))).astype(f32),  # Conv2d(5,2,(KY,KX))
    }
    HW = KY * KX
    hw5 = HW * 5

    def flat_chw(a):  # (5, KY, KX) -> (1, HW*5) with index p*5 + o, p = h*KX + w
        return jnp.transpose(a, (1, 2, 0)).reshape(1, hw5)

    # Block-diagonal 1x1-conv weight: Wbig[p*C+c, p*5+o] = pc_w[o, c]
    wpc_big = jnp.kron(jnp.eye(HW, dtype=jnp.float32), tp["pc_w"].T)             # (HW*C, HW*5)
    pcb = jnp.tile(tp["pc_b"], HW).reshape(1, hw5)                               # bias[p*5+o] = b[o]
    p100 = jnp.concatenate(
        [pcb, flat_chw(tp["ln1_w"]), flat_chw(tp["ln1_b"]),
         flat_chw(tp["lns_w"]), flat_chw(tp["lns_b"])], axis=0)                  # (5, HW*5)

    def pad16(v):
        return jnp.pad(v, (0, 16 - v.shape[0]))

    p16 = jnp.stack([tp["ln2_w"], tp["ln2_b"], pad16(tp["ln3_w"]), pad16(tp["ln3_b"])], axis=0)

    kp = {
        "wpc_big": wpc_big,
        "p100":    p100,
        "fc1_w":   jnp.transpose(tp["fc1_w"], (2, 3, 1, 0)).reshape(hw5, 16),
        "sc_w":    jnp.transpose(tp["sc_w"],  (2, 3, 1, 0)).reshape(hw5, 2),
        "p16":     p16,
        "fc2_w":   tp["fc2_w"].T,                                                # (16, 8)
        "fc3_w":   tp["fc3_w"].T,                                                # (8, 2)
    }
    return tp, kp


def reference_forward(x_nhwc, tp):
    """Pure-JAX re-implementation of the PyTorch forward (NCHW semantics) for validation."""
    x_in = jnp.transpose(x_nhwc, (0, 3, 1, 2))                                    # (B, C, H, W)
    xin = jnp.einsum("bchw,oc->bohw", x_in, tp["pc_w"]) + tp["pc_b"][None, :, None, None]

    def ln(v, w, b):
        mu = jnp.mean(v, axis=(1, 2, 3), keepdims=True)
        var = jnp.mean((v - mu) ** 2, axis=(1, 2, 3), keepdims=True)
        return (v - mu) / jnp.sqrt(var + EPS) * w[None] + b[None]

    h = jax.nn.relu(ln(xin, tp["ln1_w"], tp["ln1_b"]))
    y = jnp.einsum("bchw,fchw->bf", h, tp["fc1_w"])[:, :, None, None]             # (B,16,1,1)
    y = jax.nn.relu(ln(y, tp["ln2_w"][:, None, None], tp["ln2_b"][:, None, None]))
    y = jnp.einsum("bchw,fc->bfhw", y, tp["fc2_w"])
    y = jax.nn.relu(ln(y, tp["ln3_w"][:, None, None], tp["ln3_b"][:, None, None]))
    y = jnp.einsum("bchw,fc->bfhw", y, tp["fc3_w"])
    s = ln(xin, tp["lns_w"], tp["lns_b"])
    s = jnp.einsum("bchw,fchw->bf", s, tp["sc_w"])[:, :, None, None]
    return (y + s)[:, :, 0, 0]                                                    # (B, 2)


if __name__ == "__main__":
    # Small shapes: input_feat=32, kernel=(5,4), batch=32.
    # The adaptive tb picker takes tb_desired=1024 -> tb=16, nb=2 parallel grid steps
    # (so the v7x megacore path is exercised even at this small batch).
    B, KY, KX, C = 32, 5, 4, 32
    key = jax.random.PRNGKey(0)
    kx_key, kp_key = jax.random.split(key)

    x = jax.random.normal(kx_key, (B, KY, KX, C), dtype=jnp.float32)   # NHWC input
    tp, kp = make_params(C, KY, KX, kp_key)

    out = nikulin_fusion_forward(x, kp, tb=1024)
    out = jax.block_until_ready(out)

    ref = reference_forward(x, tp)
    np.testing.assert_allclose(np.asarray(out), np.asarray(ref), rtol=1e-4, atol=1e-5)
    assert out.shape == (B, 2)
    print("KERNEL_OK")
</pallas_src>

<mosaic_0001>
module attributes {stable_mosaic.version = 11 : i64} {
  func.func @_fusion_kernel(%arg0: i32, %arg1: memref<16x640xf32, #tpu.memory_space<vmem>>, %arg2: memref<640x100xf32, #tpu.memory_space<vmem>>, %arg3: memref<5x100xf32, #tpu.memory_space<vmem>>, %arg4: memref<100x16xf32, #tpu.memory_space<vmem>>, %arg5: memref<100x2xf32, #tpu.memory_space<vmem>>, %arg6: memref<4x16xf32, #tpu.memory_space<vmem>>, %arg7: memref<16x8xf32, #tpu.memory_space<vmem>>, %arg8: memref<8x2xf32, #tpu.memory_space<vmem>>, %arg9: memref<16x2xf32, #tpu.memory_space<vmem>>) attributes {dimension_semantics = [#tpu.dimension_semantics<parallel>], iteration_bounds = array<i64: 2>, scalar_prefetch = 0 : i64, scratch_operands = 0 : i64, tpu.core_type = #tpu.core_type<tc>, window_params = [{transform_indices = @transform_0, window_bounds = array<i64: 16, 640>}, {pipeline_mode = #tpu.pipeline_mode<synchronous>, transform_indices = @transform_1, window_bounds = array<i64: 640, 100>}, {pipeline_mode = #tpu.pipeline_mode<synchronous>, transform_indices = @transform_2, window_bounds = array<i64: 5, 100>}, {pipeline_mode = #tpu.pipeline_mode<synchronous>, transform_indices = @transform_3, window_bounds = array<i64: 100, 16>}, {pipeline_mode = #tpu.pipeline_mode<synchronous>, transform_indices = @transform_4, window_bounds = array<i64: 100, 2>}, {pipeline_mode = #tpu.pipeline_mode<synchronous>, transform_indices = @transform_5, window_bounds = array<i64: 4, 16>}, {pipeline_mode = #tpu.pipeline_mode<synchronous>, transform_indices = @transform_6, window_bounds = array<i64: 16, 8>}, {pipeline_mode = #tpu.pipeline_mode<synchronous>, transform_indices = @transform_7, window_bounds = array<i64: 8, 2>}, {transform_indices = @transform_8, window_bounds = array<i64: 16, 2>}]} {
    %c0 = arith.constant 0 : index
    %c0_0 = arith.constant 0 : index
    %0 = vector.load %arg1[%c0, %c0_0] : memref<16x640xf32, #tpu.memory_space<vmem>>, vector<16x640xf32>
    %c0_1 = arith.constant 0 : index
    %c0_2 = arith.constant 0 : index
    %1 = vector.load %arg3[%c0_1, %c0_2] : memref<5x100xf32, #tpu.memory_space<vmem>>, vector<5x100xf32>
    %c0_3 = arith.constant 0 : index
    %c0_4 = arith.constant 0 : index
    %2 = vector.load %arg6[%c0_3, %c0_4] : memref<4x16xf32, #tpu.memory_space<vmem>>, vector<4x16xf32>
    %c0_5 = arith.constant 0 : index
    %c0_6 = arith.constant 0 : index
    %3 = vector.load %arg2[%c0_5, %c0_6] : memref<640x100xf32, #tpu.memory_space<vmem>>, vector<640x100xf32>
    %cst = arith.constant dense<0.000000e+00> : vector<16x100xf32>
    %4 = tpu.matmul %0, %3, %cst {dimension_numbers = #tpu.dot_dimension_numbers<[1], [0], [0], [1], [0, 0, 1, 1], [], []>} : vector<16x640xf32>, vector<640x100xf32>, vector<16x100xf32> -> vector<16x100xf32>
    %5 = vector.extract_strided_slice %1 {offsets = [0, 0], sizes = [1, 100], strides = [1, 1]} : vector<5x100xf32> to vector<1x100xf32>
    %6 = vector.broadcast %5 : vector<1x100xf32> to vector<16x100xf32>
    %7 = arith.addf %4, %6 : vector<16x100xf32>
    %cst_7 = arith.constant dense<0.000000e+00> : vector<16xf32>
    %8 = vector.multi_reduction <add>, %7, %cst_7 [1] : vector<16x100xf32> to vector<16xf32>
    %9 = vector.shape_cast %8 : vector<16xf32> to vector<16x1xf32>
    %cst_8 = arith.constant 0.00999999977 : f32
    %10 = vector.broadcast %cst_8 : f32 to vector<16x1xf32>
    %11 = arith.mulf %9, %10 : vector<16x1xf32>
    %12 = vector.broadcast %11 : vector<16x1xf32> to vector<16x100xf32>
    %13 = arith.subf %7, %12 : vector<16x100xf32>
    %14 = arith.mulf %13, %13 : vector<16x100xf32>
    %cst_9 = arith.constant dense<0.000000e+00> : vector<16xf32>
    %15 = vector.multi_reduction <add>, %14, %cst_9 [1] : vector<16x100xf32> to vector<16xf32>
    %16 = vector.shape_cast %15 : vector<16xf32> to vector<16x1xf32>
    %cst_10 = arith.constant 0.00999999977 : f32
    %17 = vector.broadcast %cst_10 : f32 to vector<16x1xf32>
    %18 = arith.mulf %16, %17 : vector<16x1xf32>
    %cst_11 = arith.constant 9.99999974E-6 : f32
    %19 = vector.broadcast %cst_11 : f32 to vector<16x1xf32>
    %20 = arith.addf %18, %19 : vector<16x1xf32>
    %21 = math.rsqrt %20 : vector<16x1xf32>
    %22 = vector.broadcast %21 : vector<16x1xf32> to vector<16x100xf32>
    %23 = arith.mulf %13, %22 : vector<16x100xf32>
    %24 = vector.extract_strided_slice %1 {offsets = [1, 0], sizes = [1, 100], strides = [1, 1]} : vector<5x100xf32> to vector<1x100xf32>
    %25 = vector.broadcast %24 : vector<1x100xf32> to vector<16x100xf32>
    %26 = arith.mulf %23, %25 : vector<16x100xf32>
    %27 = vector.extract_strided_slice %1 {offsets = [2, 0], sizes = [1, 100], strides = [1, 1]} : vector<5x100xf32> to vector<1x100xf32>
    %28 = vector.broadcast %27 : vector<1x100xf32> to vector<16x100xf32>
    %29 = arith.addf %26, %28 : vector<16x100xf32>
    %cst_12 = arith.constant 0.000000e+00 : f32
    %30 = vector.broadcast %cst_12 : f32 to vector<16x100xf32>
    %31 = arith.maximumf %29, %30 : vector<16x100xf32>
    %c0_13 = arith.constant 0 : index
    %c0_14 = arith.constant 0 : index
    %32 = vector.load %arg4[%c0_13, %c0_14] : memref<100x16xf32, #tpu.memory_space<vmem>>, vector<100x16xf32>
    %cst_15 = arith.constant dense<0.000000e+00> : vector<16x16xf32>
    %33 = tpu.matmul %31, %32, %cst_15 {dimension_numbers = #tpu.dot_dimension_numbers<[1], [0], [0], [1], [0, 0, 1, 1], [], []>} : vector<16x100xf32>, vector<100x16xf32>, vector<16x16xf32> -> vector<16x16xf32>
    %34 = vector.extract_strided_slice %2 {offsets = [0, 0], sizes = [1, 16], strides = [1, 1]} : vector<4x16xf32> to vector<1x16xf32>
    %35 = vector.extract_strided_slice %2 {offsets = [1, 0], sizes = [1, 16], strides = [1, 1]} : vector<4x16xf32> to vector<1x16xf32>
    %cst_16 = arith.constant dense<0.000000e+00> : vector<16xf32>
    %36 = vector.multi_reduction <add>, %33, %cst_16 [1] : vector<16x16xf32> to vector<16xf32>
    %37 = vector.shape_cast %36 : vector<16xf32> to vector<16x1xf32>
    %cst_17 = arith.constant 6.250000e-02 : f32
    %38 = vector.broadcast %cst_17 : f32 to vector<16x1xf32>
    %39 = arith.mulf %37, %38 : vector<16x1xf32>
    %40 = vector.broadcast %39 : vector<16x1xf32> to vector<16x16xf32>
    %41 = arith.subf %33, %40 : vector<16x16xf32>
    %42 = arith.mulf %41, %41 : vector<16x16xf32>
    %cst_18 = arith.constant dense<0.000000e+00> : vector<16xf32>
    %43 = vector.multi_reduction <add>, %42, %cst_18 [1] : vector<16x16xf32> to vector<16xf32>
    %44 = vector.shape_cast %43 : vector<16xf32> to vector<16x1xf32>
    %cst_19 = arith.constant 6.250000e-02 : f32
    %45 = vector.broadcast %cst_19 : f32 to vector<16x1xf32>
    %46 = arith.mulf %44, %45 : vector<16x1xf32>
    %cst_20 = arith.constant 9.99999974E-6 : f32
    %47 = vector.broadcast %cst_20 : f32 to vector<16x1xf32>
    %48 = arith.addf %46, %47 : vector<16x1xf32>
    %49 = math.rsqrt %48 : vector<16x1xf32>
    %50 = vector.broadcast %49 : vector<16x1xf32> to vector<16x16xf32>
    %51 = arith.mulf %41, %50 : vector<16x16xf32>
    %52 = vector.broadcast %34 : vector<1x16xf32> to vector<16x16xf32>
    %53 = arith.mulf %51, %52 : vector<16x16xf32>
    %54 = vector.broadcast %35 : vector<1x16xf32> to vector<16x16xf32>
    %55 = arith.addf %53, %54 : vector<16x16xf32>
    %cst_21 = arith.constant 0.000000e+00 : f32
    %56 = vector.broadcast %cst_21 : f32 to vector<16x16xf32>
    %57 = arith.maximumf %55, %56 : vector<16x16xf32>
    %c0_22 = arith.constant 0 : index
    %c0_23 = arith.constant 0 : index
    %58 = vector.load %arg7[%c0_22, %c0_23] : memref<16x8xf32, #tpu.memory_space<vmem>>, vector<16x8xf32>
    %cst_24 = arith.constant dense<0.000000e+00> : vector<16x8xf32>
    %59 = tpu.matmul %57, %58, %cst_24 {dimension_numbers = #tpu.dot_dimension_numbers<[1], [0], [0], [1], [0, 0, 1, 1], [], []>} : vector<16x16xf32>, vector<16x8xf32>, vector<16x8xf32> -> vector<16x8xf32>
    %60 = vector.extract_strided_slice %2 {offsets = [2, 0], sizes = [1, 8], strides = [1, 1]} : vector<4x16xf32> to vector<1x8xf32>
    %61 = vector.extract_strided_slice %2 {offsets = [3, 0], sizes = [1, 8], strides = [1, 1]} : vector<4x16xf32> to vector<1x8xf32>
    %cst_25 = arith.constant dense<0.000000e+00> : vector<16xf32>
    %62 = vector.multi_reduction <add>, %59, %cst_25 [1] : vector<16x8xf32> to vector<16xf32>
    %63 = vector.shape_cast %62 : vector<16xf32> to vector<16x1xf32>
    %cst_26 = arith.constant 1.250000e-01 : f32
    %64 = vector.broadcast %cst_26 : f32 to vector<16x1xf32>
    %65 = arith.mulf %63, %64 : vector<16x1xf32>
    %66 = vector.broadcast %65 : vector<16x1xf32> to vector<16x8xf32>
    %67 = arith.subf %59, %66 : vector<16x8xf32>
    %68 = arith.mulf %67, %67 : vector<16x8xf32>
    %cst_27 = arith.constant dense<0.000000e+00> : vector<16xf32>
    %69 = vector.multi_reduction <add>, %68, %cst_27 [1] : vector<16x8xf32> to vector<16xf32>
    %70 = vector.shape_cast %69 : vector<16xf32> to vector<16x1xf32>
    %cst_28 = arith.constant 1.250000e-01 : f32
    %71 = vector.broadcast %cst_28 : f32 to vector<16x1xf32>
    %72 = arith.mulf %70, %71 : vector<16x1xf32>
    %cst_29 = arith.constant 9.99999974E-6 : f32
    %73 = vector.broadcast %cst_29 : f32 to vector<16x1xf32>
    %74 = arith.addf %72, %73 : vector<16x1xf32>
    %75 = math.rsqrt %74 : vector<16x1xf32>
    %76 = vector.broadcast %75 : vector<16x1xf32> to vector<16x8xf32>
    %77 = arith.mulf %67, %76 : vector<16x8xf32>
    %78 = vector.broadcast %60 : vector<1x8xf32> to vector<16x8xf32>
    %79 = arith.mulf %77, %78 : vector<16x8xf32>
    %80 = vector.broadcast %61 : vector<1x8xf32> to vector<16x8xf32>
    %81 = arith.addf %79, %80 : vector<16x8xf32>
    %cst_30 = arith.constant 0.000000e+00 : f32
    %82 = vector.broadcast %cst_30 : f32 to vector<16x8xf32>
    %83 = arith.maximumf %81, %82 : vector<16x8xf32>
    %c0_31 = arith.constant 0 : index
    %c0_32 = arith.constant 0 : index
    %84 = vector.load %arg8[%c0_31, %c0_32] : memref<8x2xf32, #tpu.memory_space<vmem>>, vector<8x2xf32>
    %cst_33 = arith.constant dense<0.000000e+00> : vector<16x2xf32>
    %85 = tpu.matmul %83, %84, %cst_33 {dimension_numbers = #tpu.dot_dimension_numbers<[1], [0], [0], [1], [0, 0, 1, 1], [], []>} : vector<16x8xf32>, vector<8x2xf32>, vector<16x2xf32> -> vector<16x2xf32>
    %86 = vector.extract_strided_slice %1 {offsets = [3, 0], sizes = [1, 100], strides = [1, 1]} : vector<5x100xf32> to vector<1x100xf32>
    %87 = vector.broadcast %86 : vector<1x100xf32> to vector<16x100xf32>
    %88 = arith.mulf %23, %87 : vector<16x100xf32>
    %89 = vector.extract_strided_slice %1 {offsets = [4, 0], sizes = [1, 100], strides = [1, 1]} : vector<5x100xf32> to vector<1x100xf32>
    %90 = vector.broadcast %89 : vector<1x100xf32> to vector<16x100xf32>
    %91 = arith.addf %88, %90 : vector<16x100xf32>
    %c0_34 = arith.constant 0 : index
    %c0_35 = arith.constant 0 : index
    %92 = vector.load %arg5[%c0_34, %c0_35] : memref<100x2xf32, #tpu.memory_space<vmem>>, vector<100x2xf32>
    %cst_36 = arith.constant dense<0.000000e+00> : vector<16x2xf32>
    %93 = tpu.matmul %91, %92, %cst_36 {dimension_numbers = #tpu.dot_dimension_numbers<[1], [0], [0], [1], [0, 0, 1, 1], [], []>} : vector<16x100xf32>, vector<100x2xf32>, vector<16x2xf32> -> vector<16x2xf32>
    %94 = arith.addf %85, %93 : vector<16x2xf32>
    %c0_37 = arith.constant 0 : index
    %c0_38 = arith.constant 0 : index
    %95 = vector.load %arg9[%c0_37, %c0_38] : memref<16x2xf32, #tpu.memory_space<vmem>>, vector<16x2xf32>
    tpu.vector_store %arg9[%c0_37, %c0_38], %94 {strides = array<i32>} : memref<16x2xf32, #tpu.memory_space<vmem>>, vector<16x2xf32>,
    return
  }
  func.func @transform_0(%arg0: i32) -> (i32, i32) {
    %c0_i32 = arith.constant 0 : i32
    %c0_i32_0 = arith.constant 0 : i32
    return %arg0, %c0_i32 : i32, i32
  }
  func.func @transform_1(%arg0: i32) -> (i32, i32) {
    %c0_i32 = arith.constant 0 : i32
    %c0_i32_0 = arith.constant 0 : i32
    %c0_i32_1 = arith.constant 0 : i32
    return %c0_i32, %c0_i32_0 : i32, i32
  }
  func.func @transform_2(%arg0: i32) -> (i32, i32) {
    %c0_i32 = arith.constant 0 : i32
    %c0_i32_0 = arith.constant 0 : i32
    %c0_i32_1 = arith.constant 0 : i32
    return %c0_i32, %c0_i32_0 : i32, i32
  }
  func.func @transform_3(%arg0: i32) -> (i32, i32) {
    %c0_i32 = arith.constant 0 : i32
    %c0_i32_0 = arith.constant 0 : i32
    %c0_i32_1 = arith.constant 0 : i32
    return %c0_i32, %c0_i32_0 : i32, i32
  }
  func.func @transform_4(%arg0: i32) -> (i32, i32) {
    %c0_i32 = arith.constant 0 : i32
    %c0_i32_0 = arith.constant 0 : i32
    %c0_i32_1 = arith.constant 0 : i32
    return %c0_i32, %c0_i32_0 : i32, i32
  }
  func.func @transform_5(%arg0: i32) -> (i32, i32) {
    %c0_i32 = arith.constant 0 : i32
    %c0_i32_0 = arith.constant 0 : i32
    %c0_i32_1 = arith.constant 0 : i32
    return %c0_i32, %c0_i32_0 : i32, i32
  }
  func.func @transform_6(%arg0: i32) -> (i32, i32) {
    %c0_i32 = arith.constant 0 : i32
    %c0_i32_0 = arith.constant 0 : i32
    %c0_i32_1 = arith.constant 0 : i32
    return %c0_i32, %c0_i32_0 : i32, i32
  }
  func.func @transform_7(%arg0: i32) -> (i32, i32) {
    %c0_i32 = arith.constant 0 : i32
    %c0_i32_0 = arith.constant 0 : i32
    %c0_i32_1 = arith.constant 0 : i32
    return %c0_i32, %c0_i32_0 : i32, i32
  }
  func.func @transform_8(%arg0: i32) -> (i32, i32) {
    %c0_i32 = arith.constant 0 : i32
    %c0_i32_0 = arith.constant 0 : i32
    return %arg0, %c0_i32 : i32, i32
  }
}

</mosaic_0001>

<llo_original>
// kernel: tpu_custom_call.1
$region0: #{tpu_custom_call.1}
  #allocation0 [shape = 'u32[]', space=smem, size = 0x4, offset = 0x4, fixed_abs, tag = 'smem constant byte address 0x4 - core index']
  #allocation1 [shape = 'u32[144,128]{1,0:T(1,128)}', space=vmem, size = 0x12000, scoped, tag = 'internal scratch']
  %s0 = inlined_call_operand.vmem [shape: f32[32,640], index: 0, kind: input, shape index: {}]
  %s1 = inlined_call_operand.vmem [shape: f32[640,100], index: 1, kind: input, shape index: {}]
  %s2 = inlined_call_operand.vmem [shape: f32[5,100], index: 2, kind: input, shape index: {}]
  %s3 = inlined_call_operand.vmem [shape: f32[100,16], index: 3, kind: input, shape index: {}]
  %s4 = inlined_call_operand.vmem [shape: f32[100,2], index: 4, kind: input, shape index: {}]
  %s5 = inlined_call_operand.vmem [shape: f32[4,16], index: 5, kind: input, shape index: {}]
  %s6 = inlined_call_operand.vmem [shape: f32[16,8], index: 6, kind: input, shape index: {}]
  %s7 = inlined_call_operand.vmem [shape: f32[8,2], index: 7, kind: input, shape index: {}]
  %s8 = inlined_call_operand.vmem [shape: f32[32,2], index: 8, kind: output, shape index: {}]
  %s9 = sld [smem:[#allocation0]]
  $region65: #{tpu_custom_call.1} parent=0
    _
  %s11 = ssub.s32 1, %s9
  %s12 = scalar_select 0, %s11, %s9
  loop: start=0, step=1, limit=4
  $region2: #{tpu_custom_call.1} parent=0 // loop_pre_header
    _
  $region3: #{tpu_custom_call.1} parent=0 // loop_header
    %s14 = sphi 0, %s18
    %p15 = scmp.ge.s32.totalorder %s14, 4
    %s24 = sphi 0, %s26
    %s27 = sphi 0, %s24
    %s28 = sphi 0, %s27
    %s44 = sphi 0, %s28
    %s48 = sphi 0, %s48
    %s50 = sphi 0, %s48
    %s51 = sphi 0, %s50
    %s65 = sphi 0, %s51
    %s69 = sphi 0, %s69
    %s71 = sphi 0, %s69
    %s72 = sphi 0, %s71
    %s86 = sphi 0, %s72
    %s90 = sphi 0, %s90
    %s92 = sphi 0, %s90
    %s93 = sphi 0, %s92
    %s107 = sphi 0, %s93
    %s111 = sphi 0, %s111
    %s113 = sphi 0, %s111
    %s114 = sphi 0, %s113
    %s128 = sphi 0, %s114
    %s132 = sphi 0, %s132
    %s134 = sphi 0, %s132
    %s135 = sphi 0, %s134
    %s149 = sphi 0, %s135
    %s153 = sphi 0, %s153
    %s155 = sphi 0, %s153
    %s156 = sphi 0, %s155
    %s170 = sphi 0, %s156
    %s174 = sphi 0, %s174
    %s176 = sphi 0, %s174
    %s177 = sphi 0, %s176
    %s191 = sphi 0, %s177
    %s197 = sphi 0, %s199
    %s200 = sphi 0, %s197
    %s201 = sphi 0, %s200
    %s217 = sphi 0, %s201
  $region4: #{tpu_custom_call.1} parent=0 // loop_header_branch
    %17 = sbr.rel (%p15) target = $region8
  $region5: #{tpu_custom_call.1} parent=0 // loop_body
    %s19 = ssub.s32 %s14, 1
    %s20 = ssub.s32 %s14, 2
    %s21 = sadd.s32 %s14, 1
    %s22 = ssub.s32 %s14, %s21
    %p23 = scmp.eq.s32.totalorder %s22, 0
    %s25 = sadd.s32 %s24, 1
    %s26 = scalar_select %p23, %s24, %s25
    %p29 = pneg %p23
    %p30 = scmp.eq.s32.totalorder %s14, 1
    %p31 = por %p29, %p30
    %p32 = scmp.ne.s32.totalorder %s24, %s27
    %p33 = scmp.eq.s32.totalorder %s14, 0
    %p34 = por %p32, %p33
    %p35 = scmp.ne.s32.totalorder %s24, %s27
    %p36 = scmp.eq.s32.totalorder %s19, 1
    %p37 = por %p35, %p36
    %p38 = scmp.ne.s32.totalorder %s27, %s28
    %p39 = scmp.eq.s32.totalorder %s19, 0
    %p40 = por %p38, %p39
    %p41 = scmp.ne.s32.totalorder %s27, %s28
    %p42 = scmp.eq.s32.totalorder %s20, 1
    %p43 = por %p41, %p42
    %p45 = scmp.ne.s32.totalorder %s28, %s44
    %p46 = scmp.eq.s32.totalorder %s20, 0
    %p47 = por %p45, %p46
    %s49 = sadd.s32 %s48, 1
    %p52 = scmp.eq.s32.totalorder %s14, 1
    %p53 = scmp.ne.s32.totalorder %s48, %s50
    %p54 = scmp.eq.s32.totalorder %s14, 0
    %p55 = por %p53, %p54
    %p56 = scmp.ne.s32.totalorder %s48, %s50
    %p57 = scmp.eq.s32.totalorder %s19, 1
    %p58 = por %p56, %p57
    %p59 = scmp.ne.s32.totalorder %s50, %s51
    %p60 = scmp.eq.s32.totalorder %s19, 0
    %p61 = por %p59, %p60
    %p62 = scmp.ne.s32.totalorder %s50, %s51
    %p63 = scmp.eq.s32.totalorder %s20, 1
    %p64 = por %p62, %p63
    %p66 = scmp.ne.s32.totalorder %s51, %s65
    %p67 = scmp.eq.s32.totalorder %s20, 0
    %p68 = por %p66, %p67
    %s70 = sadd.s32 %s69, 1
    %p73 = scmp.eq.s32.totalorder %s14, 1
    %p74 = scmp.ne.s32.totalorder %s69, %s71
    %p75 = scmp.eq.s32.totalorder %s14, 0
    %p76 = por %p74, %p75
    %p77 = scmp.ne.s32.totalorder %s69, %s71
    %p78 = scmp.eq.s32.totalorder %s19, 1
    %p79 = por %p77, %p78
    %p80 = scmp.ne.s32.totalorder %s71, %s72
    %p81 = scmp.eq.s32.totalorder %s19, 0
    %p82 = por %p80, %p81
    %p83 = scmp.ne.s32.totalorder %s71, %s72
    %p84 = scmp.eq.s32.totalorder %s20, 1
    %p85 = por %p83, %p84
    %p87 = scmp.ne.s32.totalorder %s72, %s86
    %p88 = scmp.eq.s32.totalorder %s20, 0
    %p89 = por %p87, %p88
    %s91 = sadd.s32 %s90, 1
    %p94 = scmp.eq.s32.totalorder %s14, 1
    %p95 = scmp.ne.s32.totalorder %s90, %s92
    %p96 = scmp.eq.s32.totalorder %s14, 0
    %p97 = por %p95, %p96
    %p98 = scmp.ne.s32.totalorder %s90, %s92
    %p99 = scmp.eq.s32.totalorder %s19, 1
    %p100 = por %p98, %p99
    %p101 = scmp.ne.s32.totalorder %s92, %s93
    %p102 = scmp.eq.s32.totalorder %s19, 0
    %p103 = por %p101, %p102
    %p104 = scmp.ne.s32.totalorder %s92, %s93
    %p105 = scmp.eq.s32.totalorder %s20, 1
    %p106 = por %p104, %p105
    %p108 = scmp.ne.s32.totalorder %s93, %s107
    %p109 = scmp.eq.s32.totalorder %s20, 0
    %p110 = por %p108, %p109
    %s112 = sadd.s32 %s111, 1
    %p115 = scmp.eq.s32.totalorder %s14, 1
    %p116 = scmp.ne.s32.totalorder %s111, %s113
    %p117 = scmp.eq.s32.totalorder %s14, 0
    %p118 = por %p116, %p117
    %p119 = scmp.ne.s32.totalorder %s111, %s113
    %p120 = scmp.eq.s32.totalorder %s19, 1
    %p121 = por %p119, %p120
    %p122 = scmp.ne.s32.totalorder %s113, %s114
    %p123 = scmp.eq.s32.totalorder %s19, 0
    %p124 = por %p122, %p123
    %p125 = scmp.ne.s32.totalorder %s113, %s114
    %p126 = scmp.eq.s32.totalorder %s20, 1
    %p127 = por %p125, %p126
    %p129 = scmp.ne.s32.totalorder %s114, %s128
    %p130 = scmp.eq.s32.totalorder %s20, 0
    %p131 = por %p129, %p130
    %s133 = sadd.s32 %s132, 1
    %p136 = scmp.eq.s32.totalorder %s14, 1
    %p137 = scmp.ne.s32.totalorder %s132, %s134
    %p138 = scmp.eq.s32.totalorder %s14, 0
    %p139 = por %p137, %p138
    %p140 = scmp.ne.s32.totalorder %s132, %s134
    %p141 = scmp.eq.s32.totalorder %s19, 1
    %p142 = por %p140, %p141
    %p143 = scmp.ne.s32.totalorder %s134, %s135
    %p144 = scmp.eq.s32.totalorder %s19, 0
    %p145 = por %p143, %p144
    %p146 = scmp.ne.s32.totalorder %s134, %s135
    %p147 = scmp.eq.s32.totalorder %s20, 1
    %p148 = por %p146, %p147
    %p150 = scmp.ne.s32.totalorder %s135, %s149
    %p151 = scmp.eq.s32.totalorder %s20, 0
    %p152 = por %p150, %p151
    %s154 = sadd.s32 %s153, 1
    %p157 = scmp.eq.s32.totalorder %s14, 1
    %p158 = scmp.ne.s32.totalorder %s153, %s155
    %p159 = scmp.eq.s32.totalorder %s14, 0
    %p160 = por %p158, %p159
    %p161 = scmp.ne.s32.totalorder %s153, %s155
    %p162 = scmp.eq.s32.totalorder %s19, 1
    %p163 = por %p161, %p162
    %p164 = scmp.ne.s32.totalorder %s155, %s156
    %p165 = scmp.eq.s32.totalorder %s19, 0
    %p166 = por %p164, %p165
    %p167 = scmp.ne.s32.totalorder %s155, %s156
    %p168 = scmp.eq.s32.totalorder %s20, 1
    %p169 = por %p167, %p168
    %p171 = scmp.ne.s32.totalorder %s156, %s170
    %p172 = scmp.eq.s32.totalorder %s20, 0
    %p173 = por %p171, %p172
    %s175 = sadd.s32 %s174, 1
    %p178 = scmp.eq.s32.totalorder %s14, 1
    %p179 = scmp.ne.s32.totalorder %s174, %s176
    %p180 = scmp.eq.s32.totalorder %s14, 0
    %p181 = por %p179, %p180
    %p182 = scmp.ne.s32.totalorder %s174, %s176
    %p183 = scmp.eq.s32.totalorder %s19, 1
    %p184 = por %p182, %p183
    %p185 = scmp.ne.s32.totalorder %s176, %s177
    %p186 = scmp.eq.s32.totalorder %s19, 0
    %p187 = por %p185, %p186
    %p188 = scmp.ne.s32.totalorder %s176, %s177
    %p189 = scmp.eq.s32.totalorder %s20, 1
    %p190 = por %p188, %p189
    %p192 = scmp.ne.s32.totalorder %s177, %s191
    %p193 = scmp.eq.s32.totalorder %s20, 0
    %p194 = por %p192, %p193
    %s195 = ssub.s32 %s14, %s21
    %p196 = scmp.eq.s32.totalorder %s195, 0
    %s198 = sadd.s32 %s197, 1
    %s199 = scalar_select %p196, %s197, %s198
    %p202 = pneg %p196
    %p203 = scmp.eq.s32.totalorder %s14, 1
    %p204 = por %p202, %p203
    %p205 = scmp.ne.s32.totalorder %s197, %s200
    %p206 = scmp.eq.s32.totalorder %s14, 0
    %p207 = por %p205, %p206
    %p208 = scmp.ne.s32.totalorder %s197, %s200
    %p209 = scmp.eq.s32.totalorder %s19, 1
    %p210 = por %p208, %p209
    %p211 = scmp.ne.s32.totalorder %s200, %s201
    %p212 = scmp.eq.s32.totalorder %s19, 0
    %p213 = por %p211, %p212
    %p214 = scmp.ne.s32.totalorder %s200, %s201
    %p215 = scmp.eq.s32.totalorder %s20, 1
    %p216 = por %p214, %p215
    %p218 = scmp.ne.s32.totalorder %s201, %s217
    %p219 = scmp.eq.s32.totalorder %s20, 0
    %p220 = por %p218, %p219
    %p221 = scmp.le.s32.totalorder 1, %s14
    %p222 = scmp.lt.s32.totalorder %s14, 3
    %p223 = pnand %p221, %p222
    %p224 = pneg %p223
    // Predicated region
    $region9: #{tpu_custom_call.1} parent=5 // pred_check
      _
    $region10: #{tpu_custom_call.1} parent=5 // pred_check_branch
      %226 = sbr.rel (%p223) target = $region12
    $region11: #{tpu_custom_call.1} parent=5 // pred_region
      %s227 = ssub.s32 %s14, 1
      // Predicated region
      $region13: #{tpu_custom_call.1} parent=11 // pred_check
        %p228 = pneg %p61
      $region14: #{tpu_custom_call.1} parent=11 // pred_check_branch
        %230 = sbr.rel (%p228) target = $region16
      $region15: #{tpu_custom_call.1} parent=11 // pred_region
        _
      $region16: #{tpu_custom_call.1} parent=11 // pred_fallthru
        _
      // Predicated region
      $region17: #{tpu_custom_call.1} parent=11 // pred_check
        %p231 = pneg %p82
      $region18: #{tpu_custom_call.1} parent=11 // pred_check_branch
        %233 = sbr.rel (%p231) target = $region20
      $region19: #{tpu_custom_call.1} parent=11 // pred_region
        _
      $region20: #{tpu_custom_call.1} parent=11 // pred_fallthru
        _
      // Predicated region
      $region21: #{tpu_custom_call.1} parent=11 // pred_check
        %p234 = pneg %p103
      $region22: #{tpu_custom_call.1} parent=11 // pred_check_branch
        %236 = sbr.rel (%p234) target = $region24
      $region23: #{tpu_custom_call.1} parent=11 // pred_region
        _
      $region24: #{tpu_custom_call.1} parent=11 // pred_fallthru
        _
      // Predicated region
      $region25: #{tpu_custom_call.1} parent=11 // pred_check
        %p237 = pneg %p124
      $region26: #{tpu_custom_call.1} parent=11 // pred_check_branch
        %239 = sbr.rel (%p237) target = $region28
      $region27: #{tpu_custom_call.1} parent=11 // pred_region
        _
      $region28: #{tpu_custom_call.1} parent=11 // pred_fallthru
        _
      // Predicated region
      $region29: #{tpu_custom_call.1} parent=11 // pred_check
        %p240 = pneg %p145
      $region30: #{tpu_custom_call.1} parent=11 // pred_check_branch
        %242 = sbr.rel (%p240) target = $region32
      $region31: #{tpu_custom_call.1} parent=11 // pred_region
        _
      $region32: #{tpu_custom_call.1} parent=11 // pred_fallthru
        _
      // Predicated region
      $region33: #{tpu_custom_call.1} parent=11 // pred_check
        %p243 = pneg %p166
      $region34: #{tpu_custom_call.1} parent=11 // pred_check_branch
        %245 = sbr.rel (%p243) target = $region36
      $region35: #{tpu_custom_call.1} parent=11 // pred_region
        _
      $region36: #{tpu_custom_call.1} parent=11 // pred_fallthru
        _
      // Predicated region
      $region37: #{tpu_custom_call.1} parent=11 // pred_check
        %p246 = pneg %p187
      $region38: #{tpu_custom_call.1} parent=11 // pred_check_branch
        %248 = sbr.rel (%p246) target = $region40
      $region39: #{tpu_custom_call.1} parent=11 // pred_region
        _
      $region40: #{tpu_custom_call.1} parent=11 // pred_fallthru
        _
    $region12: #{tpu_custom_call.1} parent=5 // pred_fallthru
      _
    %p249 = scmp.lt.s32.totalorder %s14, 2
    // Predicated region
    $region41: #{tpu_custom_call.1} parent=5 // pred_check
      %p250 = pneg %p249
    $region42: #{tpu_custom_call.1} parent=5 // pred_check_branch
      %252 = sbr.rel (%p250) target = $region44
    $region43: #{tpu_custom_call.1} parent=5 // pred_region
      // Predicated region
      $region45: #{tpu_custom_call.1} parent=43 // pred_check
        %p253 = pneg %p34
      $region46: #{tpu_custom_call.1} parent=43 // pred_check_branch
        %255 = sbr.rel (%p253) target = $region48
      $region47: #{tpu_custom_call.1} parent=43 // pred_region
        %s256 = smul.u32 2, %s14
        %p257 = scmp.lt.s32.totalorder %s256, 3
        %s258 = scalar_select %p257, %s256, 3
        %s259 = smul.addr %s258, 5
        %s260 = smul.addr %s259, 8
        %s261 = scalar_lea.vmem %s0, %s260
        %s262 = smul.u32 2, %s14
      $region48: #{tpu_custom_call.1} parent=43 // pred_fallthru
        _
    $region44: #{tpu_custom_call.1} parent=5 // pred_fallthru
      _
    %p263 = scmp.le.s32.totalorder 1, %s14
    %p264 = scmp.lt.s32.totalorder %s14, 3
    %p265 = pnand %p263, %p264
    %p266 = pneg %p265
    // Predicated region
    $region49: #{tpu_custom_call.1} parent=5 // pred_check
      _
    $region50: #{tpu_custom_call.1} parent=5 // pred_check_branch
      %268 = sbr.rel (%p265) target = $region52
    $region51: #{tpu_custom_call.1} parent=5 // pred_region
      %s269 = ssub.s32 %s14, 1
      %s270 = smul.u32 2, %s19
      %p271 = scmp.lt.s32.totalorder %s270, 3
      %s272 = scalar_select %p271, %s270, 3
      %s273 = smul.addr %s272, 5
      %s274 = smul.addr %s273, 8
      %s275 = scalar_lea.vmem %s0, %s274
      %p276 = pneg %p40
      %p277 = pneg %p37
      %p278 = pneg %p61
      %p279 = pneg %p58
      %p280 = pneg %p82
      %p281 = pneg %p79
      %p282 = pneg %p103
      %p283 = pneg %p100
      %p284 = pneg %p124
      %p285 = pneg %p121
      %p286 = pneg %p145
      %p287 = pneg %p142
      %p288 = pneg %p166
      %p289 = pneg %p163
      %p290 = pneg %p187
      %p291 = pneg %p184
      %p292 = pneg %p213
      %p293 = pneg %p210
      %s294 = smul.u32 2, %s19
      %p295 = scmp.lt.s32.totalorder %s294, 3
      %s296 = scalar_select %p295, %s294, 3
      %s297 = smul.addr %s296, 8
      %s298 = scalar_lea.vmem %s8, %s297
      %s299 = smul.u32 2, %s19
      %p300 = scmp.lt.s32.totalorder %s299, 3
      %s301 = scalar_select %p300, %s299, 3
      %s302 = smul.addr %s301, 5
      %s303 = smul.addr %s302, 8
      %s304 = scalar_lea.vmem %s0, %s303
      %s305 = smul.u32 2, %s19
      %s306 = smul.u32 2, %s19
      %p307 = scmp.lt.s32.totalorder %s306, 3
      %s308 = scalar_select %p307, %s306, 3
      %s309 = smul.addr %s308, 8
      %s310 = scalar_lea.vmem %s8, %s309
      %s311 = smul.u32 2, %s19
      %v312 = vld [vmem:[%s304] sm:$0xff]
      %v313 = vld [vmem:[%s304 + $0x8] sm:$0xff]
      %v314 = vld [vmem:[%s304 + $0x10] sm:$0xff]
      %v315 = vld [vmem:[%s304 + $0x18] sm:$0xff]
      %v316 = vld [vmem:[%s304 + $0x20] sm:$0xff]
      %v317 = vld [vmem:[%s304 + $0x28] sm:$0xff]
      %v318 = vld [vmem:[%s304 + $0x30] sm:$0xff]
      %v319 = vld [vmem:[%s304 + $0x38] sm:$0xff]
      %v320 = vld [vmem:[%s304 + $0x40] sm:$0xff]
      %v321 = vld [vmem:[%s304 + $0x48] sm:$0xff]
      %v322 = vld [vmem:[%s2] sm:$0x1f]
      %v323 = vld [vmem:[%s5] sm:$0xf]
      %v324 = vld [vmem:[%s1] sm:$0xff]
      %v325 = vld [vmem:[%s1 + $0x8] sm:$0xff]
      %v326 = vld [vmem:[%s1 + $0x10] sm:$0xff]
      %v327 = vld [vmem:[%s1 + $0x18] sm:$0xff]
      %v328 = vld [vmem:[%s1 + $0x20] sm:$0xff]
      %v329 = vld [vmem:[%s1 + $0x28] sm:$0xff]
      %v330 = vld [vmem:[%s1 + $0x30] sm:$0xff]
      %v331 = vld [vmem:[%s1 + $0x38] sm:$0xff]
      %v332 = vld [vmem:[%s1 + $0x40] sm:$0xff]
      %v333 = vld [vmem:[%s1 + $0x48] sm:$0xff]
      %v334 = vld [vmem:[%s1 + $0x50] sm:$0xff]
      %v335 = vld [vmem:[%s1 + $0x58] sm:$0xff]
      %v336 = vld [vmem:[%s1 + $0x60] sm:$0xff]
      %v337 = vld [vmem:[%s1 + $0x68] sm:$0xff]
      %v338 = vld [vmem:[%s1 + $0x70] sm:$0xff]
      %v339 = vld [vmem:[%s1 + $0x78] sm:$0xff]
      %v340 = vld [vmem:[%s1 + $0x80] sm:$0xff]
      %v341 = vld [vmem:[%s1 + $0x88] sm:$0xff]
      %v342 = vld [vmem:[%s1 + $0x90] sm:$0xff]
      %v343 = vld [vmem:[%s1 + $0x98] sm:$0xff]
      %v344 = vld [vmem:[%s1 + $0xa0] sm:$0xff]
      %v345 = vld [vmem:[%s1 + $0xa8] sm:$0xff]
      %v346 = vld [vmem:[%s1 + $0xb0] sm:$0xff]
      %v347 = vld [vmem:[%s1 + $0xb8] sm:$0xff]
      %v348 = vld [vmem:[%s1 + $0xc0] sm:$0xff]
      %v349 = vld [vmem:[%s1 + $0xc8] sm:$0xff]
      %v350 = vld [vmem:[%s1 + $0xd0] sm:$0xff]
      %v351 = vld [vmem:[%s1 + $0xd8] sm:$0xff]
      %v352 = vld [vmem:[%s1 + $0xe0] sm:$0xff]
      %v353 = vld [vmem:[%s1 + $0xe8] sm:$0xff]
      %v354 = vld [vmem:[%s1 + $0xf0] sm:$0xff]
      %v355 = vld [vmem:[%s1 + $0xf8] sm:$0xff]
      %v356 = vld [vmem:[%s1 + $0x100] sm:$0xff]
      %v357 = vld [vmem:[%s1 + $0x108] sm:$0xff]
      %v358 = vld [vmem:[%s1 + $0x110] sm:$0xff]
      %v359 = vld [vmem:[%s1 + $0x118] sm:$0xff]
      %v360 = vld [vmem:[%s1 + $0x120] sm:$0xff]
      %v361 = vld [vmem:[%s1 + $0x128] sm:$0xff]
      %v362 = vld [vmem:[%s1 + $0x130] sm:$0xff]
      %v363 = vld [vmem:[%s1 + $0x138] sm:$0xff]
      %v364 = vld [vmem:[%s1 + $0x140] sm:$0xff]
      %v365 = vld [vmem:[%s1 + $0x148] sm:$0xff]
      %v366 = vld [vmem:[%s1 + $0x150] sm:$0xff]
      %v367 = vld [vmem:[%s1 + $0x158] sm:$0xff]
      %v368 = vld [vmem:[%s1 + $0x160] sm:$0xff]
      %v369 = vld [vmem:[%s1 + $0x168] sm:$0xff]
      %v370 = vld [vmem:[%s1 + $0x170] sm:$0xff]
      %v371 = vld [vmem:[%s1 + $0x178] sm:$0xff]
      %v372 = vld [vmem:[%s1 + $0x180] sm:$0xff]
      %v373 = vld [vmem:[%s1 + $0x188] sm:$0xff]
      %v374 = vld [vmem:[%s1 + $0x190] sm:$0xff]
      %v375 = vld [vmem:[%s1 + $0x198] sm:$0xff]
      %v376 = vld [vmem:[%s1 + $0x1a0] sm:$0xff]
      %v377 = vld [vmem:[%s1 + $0x1a8] sm:$0xff]
      %v378 = vld [vmem:[%s1 + $0x1b0] sm:$0xff]
      %v379 = vld [vmem:[%s1 + $0x1b8] sm:$0xff]
      %v380 = vld [vmem:[%s1 + $0x1c0] sm:$0xff]
      %v381 = vld [vmem:[%s1 + $0x1c8] sm:$0xff]
      %v382 = vld [vmem:[%s1 + $0x1d0] sm:$0xff]
      %v383 = vld [vmem:[%s1 + $0x1d8] sm:$0xff]
      %v384 = vld [vmem:[%s1 + $0x1e0] sm:$0xff]
      %v385 = vld [vmem:[%s1 + $0x1e8] sm:$0xff]
      %v386 = vld [vmem:[%s1 + $0x1f0] sm:$0xff]
      %v387 = vld [vmem:[%s1 + $0x1f8] sm:$0xff]
      %v388 = vld [vmem:[%s1 + $0x200] sm:$0xff]
      %v389 = vld [vmem:[%s1 + $0x208] sm:$0xff]
      %v390 = vld [vmem:[%s1 + $0x210] sm:$0xff]
      %v391 = vld [vmem:[%s1 + $0x218] sm:$0xff]
      %v392 = vld [vmem:[%s1 + $0x220] sm:$0xff]
      %v393 = vld [vmem:[%s1 + $0x228] sm:$0xff]
      %v394 = vld [vmem:[%s1 + $0x230] sm:$0xff]
      %v395 = vld [vmem:[%s1 + $0x238] sm:$0xff]
      %v396 = vld [vmem:[%s1 + $0x240] sm:$0xff]
      %v397 = vld [vmem:[%s1 + $0x248] sm:$0xff]
      %v398 = vld [vmem:[%s1 + $0x250] sm:$0xff]
      %v399 = vld [vmem:[%s1 + $0x258] sm:$0xff]
      %v400 = vld [vmem:[%s1 + $0x260] sm:$0xff]
      %v401 = vld [vmem:[%s1 + $0x268] sm:$0xff]
      %v402 = vld [vmem:[%s1 + $0x270] sm:$0xff]
      %v403 = vld [vmem:[%s1 + $0x278] sm:$0xff]
      %v404 = vlaneseq
      %v405 = vshrl.u32 %v404, 7
      %v406 = vsub.s32 0, %v405
      %v407 = vrot.slane %v322, %v406
      %408 = vmatprep.subr.mxu0 0.0
      %409 = vmatpush1.msra.mxu0 %v324
      %410 = vmatprep.subr.mxu0 0.0
      %411 = vmatpush1.msra.mxu0 %v325
      %412 = vmatprep.subr.mxu0 0.0
      %413 = vmatpush1.msra.mxu0 %v326
      %414 = vmatprep.subr.mxu0 0.0
      %415 = vmatpush1.msra.mxu0 %v327
      %416 = vmatprep.subr.mxu0 0.0
      %417 = vmatpush1.msra.mxu0 %v328
      %418 = vmatprep.subr.mxu0 0.0
      %419 = vmatpush1.msra.mxu0 %v329
      %420 = vmatprep.subr.mxu0 0.0
      %421 = vmatpush1.msra.mxu0 %v330
      %422 = vmatprep.subr.mxu0 0.0
      %423 = vmatpush1.msra.mxu0 %v331
      %424 = vmatprep.subr.mxu0 0.0
      %425 = vmatpush1.msra.mxu0 %v332
      %426 = vmatprep.subr.mxu0 0.0
      %427 = vmatpush1.msra.mxu0 %v333
      %428 = vmatprep.subr.mxu0 0.0
      %429 = vmatpush1.msra.mxu0 %v334
      %430 = vmatprep.subr.mxu0 0.0
      %431 = vmatpush1.msra.mxu0 %v335
      %432 = vmatprep.subr.mxu0 0.0
      %433 = vmatpush1.msra.mxu0 %v336
      %434 = vmatprep.subr.mxu0 0.0
      %435 = vmatpush1.msra.mxu0 %v337
      %436 = vmatprep.subr.mxu0 0.0
      %437 = vmatpush1.msra.mxu0 %v338
      %438 = vmatprep.subr.mxu0 0.0
      %439 = vmatpush1.msra.mxu0 %v339
      %440 = vmatprep.subr.mxu0 0.0
      %441 = vmatpush1.msra.mxu0 %v340
      %442 = vmatprep.subr.mxu0 0.0
      %443 = vmatpush1.msra.mxu0 %v341
      %444 = vmatprep.subr.mxu0 0.0
      %445 = vmatpush1.msra.mxu0 %v342
      %446 = vmatprep.subr.mxu0 0.0
      %447 = vmatpush1.msra.mxu0 %v343
      %448 = vmatprep.subr.mxu0 0.0
      %449 = vmatpush1.msra.mxu0 %v344
      %450 = vmatprep.subr.mxu0 0.0
      %451 = vmatpush1.msra.mxu0 %v345
      %452 = vmatprep.subr.mxu0 0.0
      %453 = vmatpush1.msra.mxu0 %v346
      %454 = vmatprep.subr.mxu0 0.0
      %455 = vmatpush1.msra.mxu0 %v347
      %456 = vmatprep.subr.mxu0 0.0
      %457 = vmatpush1.msra.mxu0 %v348
      %458 = vmatprep.subr.mxu0 0.0
      %459 = vmatpush1.msra.mxu0 %v349
      %460 = vmatprep.subr.mxu0 0.0
      %461 = vmatpush1.msra.mxu0 %v350
      %462 = vmatprep.subr.mxu0 0.0
      %463 = vmatpush1.msra.mxu0 %v351
      %464 = vmatprep.subr.mxu0 0.0
      %465 = vmatpush1.msra.mxu0 %v352
      %466 = vmatprep.subr.mxu0 0.0
      %467 = vmatpush1.msra.mxu0 %v353
      %468 = vmatprep.subr.mxu0 0.0
      %469 = vmatpush1.msra.mxu0 %v354
      %470 = vmatprep.subr.mxu0 0.0
      %471 = vmatpush1.msra.mxu0 %v355
      %472 = vmatprep.mubr.f32.mxu0 %v313
      %473 = vmatmul.mubr.f32.gmra.mrb[0].mxu0 %v312
      %v474 = vpop.f32.mrb[0].mxu0
      %v475 = vadd.f32 %v407, %v474
      %v476 = vpop.f32.mrb[0].mxu0
      %477 = vmatprep.mubr.f32.mxu0 %v318
      %478 = vmatmul.mubr.f32.gmra.mrb[0].mxu0 %v317
      %v479 = vpop.f32.mrb[0].mxu0
      %v480 = vadd.f32 %v407, %v479
      %v481 = vpop.f32.mrb[0].mxu0
      %482 = vdwg.mxu0
      %483 = vmatprep.subr.mxu0 0.0
      %484 = vmatpush1.msra.mxu0 %v356
      %485 = vmatprep.subr.mxu0 0.0
      %486 = vmatpush1.msra.mxu0 %v357
      %487 = vmatprep.subr.mxu0 0.0
      %488 = vmatpush1.msra.mxu0 %v358
      %489 = vmatprep.subr.mxu0 0.0
      %490 = vmatpush1.msra.mxu0 %v359
      %491 = vmatprep.subr.mxu0 0.0
      %492 = vmatpush1.msra.mxu0 %v360
      %493 = vmatprep.subr.mxu0 0.0
      %494 = vmatpush1.msra.mxu0 %v361
      %495 = vmatprep.subr.mxu0 0.0
      %496 = vmatpush1.msra.mxu0 %v362
      %497 = vmatprep.subr.mxu0 0.0
      %498 = vmatpush1.msra.mxu0 %v363
      %499 = vmatprep.subr.mxu0 0.0
      %500 = vmatpush1.msra.mxu0 %v364
      %501 = vmatprep.subr.mxu0 0.0
      %502 = vmatpush1.msra.mxu0 %v365
      %503 = vmatprep.subr.mxu0 0.0
      %504 = vmatpush1.msra.mxu0 %v366
      %505 = vmatprep.subr.mxu0 0.0
      %506 = vmatpush1.msra.mxu0 %v367
      %507 = vmatprep.subr.mxu0 0.0
      %508 = vmatpush1.msra.mxu0 %v368
      %509 = vmatprep.subr.mxu0 0.0
      %510 = vmatpush1.msra.mxu0 %v369
      %511 = vmatprep.subr.mxu0 0.0
      %512 = vmatpush1.msra.mxu0 %v370
      %513 = vmatprep.subr.mxu0 0.0
      %514 = vmatpush1.msra.mxu0 %v371
      %515 = vmatprep.subr.mxu0 0.0
      %516 = vmatpush1.msra.mxu0 %v372
      %517 = vmatprep.subr.mxu0 0.0
      %518 = vmatpush1.msra.mxu0 %v373
      %519 = vmatprep.subr.mxu0 0.0
      %520 = vmatpush1.msra.mxu0 %v374
      %521 = vmatprep.subr.mxu0 0.0
      %522 = vmatpush1.msra.mxu0 %v375
      %523 = vmatprep.subr.mxu0 0.0
      %524 = vmatpush1.msra.mxu0 %v376
      %525 = vmatprep.subr.mxu0 0.0
      %526 = vmatpush1.msra.mxu0 %v377
      %527 = vmatprep.subr.mxu0 0.0
      %528 = vmatpush1.msra.mxu0 %v378
      %529 = vmatprep.subr.mxu0 0.0
      %530 = vmatpush1.msra.mxu0 %v379
      %531 = vmatprep.subr.mxu0 0.0
      %532 = vmatpush1.msra.mxu0 %v380
      %533 = vmatprep.subr.mxu0 0.0
      %534 = vmatpush1.msra.mxu0 %v381
      %535 = vmatprep.subr.mxu0 0.0
      %536 = vmatpush1.msra.mxu0 %v382
      %537 = vmatprep.subr.mxu0 0.0
      %538 = vmatpush1.msra.mxu0 %v383
      %539 = vmatprep.subr.mxu0 0.0
      %540 = vmatpush1.msra.mxu0 %v384
      %541 = vmatprep.subr.mxu0 0.0
      %542 = vmatpush1.msra.mxu0 %v385
      %543 = vmatprep.subr.mxu0 0.0
      %544 = vmatpush1.msra.mxu0 %v386
      %545 = vmatprep.subr.mxu0 0.0
      %546 = vmatpush1.msra.mxu0 %v387
      %547 = vmatprep.mubr.f32.mxu0 %v315
      %548 = vmatmul.mubr.f32.gmra.mrb[0].mxu0 %v314
      %v549 = vpop.f32.mrb[0].mxu0
      %v550 = vadd.f32 %v475, %v549
      %v551 = vpop.f32.mrb[0].mxu0
      %552 = vmatprep.mubr.f32.mxu0 %v320
      %553 = vmatmul.mubr.f32.gmra.mrb[0].mxu0 %v319
      %v554 = vpop.f32.mrb[0].mxu0
      %v555 = vadd.f32 %v480, %v554
      %v556 = vpop.f32.mrb[0].mxu0
      %557 = vdwg.mxu0
      %558 = vmatprep.subr.mxu0 0.0
      %559 = vmatpush1.msra.mxu0 %v388
      %560 = vmatprep.subr.mxu0 0.0
      %561 = vmatpush1.msra.mxu0 %v389
      %562 = vmatprep.subr.mxu0 0.0
      %563 = vmatpush1.msra.mxu0 %v390
      %564 = vmatprep.subr.mxu0 0.0
      %565 = vmatpush1.msra.mxu0 %v391
      %566 = vmatprep.subr.mxu0 0.0
      %567 = vmatpush1.msra.mxu0 %v392
      %568 = vmatprep.subr.mxu0 0.0
      %569 = vmatpush1.msra.mxu0 %v393
      %570 = vmatprep.subr.mxu0 0.0
      %571 = vmatpush1.msra.mxu0 %v394
      %572 = vmatprep.subr.mxu0 0.0
      %573 = vmatpush1.msra.mxu0 %v395
      %574 = vmatprep.subr.mxu0 0.0
      %575 = vmatpush1.msra.mxu0 %v396
      %576 = vmatprep.subr.mxu0 0.0
      %577 = vmatpush1.msra.mxu0 %v397
      %578 = vmatprep.subr.mxu0 0.0
      %579 = vmatpush1.msra.mxu0 %v398
      %580 = vmatprep.subr.mxu0 0.0
      %581 = vmatpush1.msra.mxu0 %v399
      %582 = vmatprep.subr.mxu0 0.0
      %583 = vmatpush1.msra.mxu0 %v400
      %584 = vmatprep.subr.mxu0 0.0
      %585 = vmatpush1.msra.mxu0 %v401
      %586 = vmatprep.subr.mxu0 0.0
      %587 = vmatpush1.msra.mxu0 %v402
      %588 = vmatprep.subr.mxu0 0.0
      %589 = vmatpush1.msra.mxu0 %v403
      %590 = vmatprep.subr.mxu0 0.0
      %591 = vmatpush1.msra.mxu0 0.0
      %592 = vmatprep.subr.mxu0 0.0
      %593 = vmatpush1.msra.mxu0 0.0
      %594 = vmatprep.subr.mxu0 0.0
      %595 = vmatpush1.msra.mxu0 0.0
      %596 = vmatprep.subr.mxu0 0.0
      %597 = vmatpush1.msra.mxu0 0.0
      %598 = vmatprep.subr.mxu0 0.0
      %599 = vmatpush1.msra.mxu0 0.0
      %600 = vmatprep.subr.mxu0 0.0
      %601 = vmatpush1.msra.mxu0 0.0
      %602 = vmatprep.subr.mxu0 0.0
      %603 = vmatpush1.msra.mxu0 0.0
      %604 = vmatprep.subr.mxu0 0.0
      %605 = vmatpush1.msra.mxu0 0.0
      %606 = vmatprep.subr.mxu0 0.0
      %607 = vmatpush1.msra.mxu0 0.0
      %608 = vmatprep.subr.mxu0 0.0
      %609 = vmatpush1.msra.mxu0 0.0
      %610 = vmatprep.subr.mxu0 0.0
      %611 = vmatpush1.msra.mxu0 0.0
      %612 = vmatprep.subr.mxu0 0.0
      %613 = vmatpush1.msra.mxu0 0.0
      %614 = vmatprep.subr.mxu0 0.0
      %615 = vmatpush1.msra.mxu0 0.0
      %616 = vmatprep.subr.mxu0 0.0
      %617 = vmatpush1.msra.mxu0 0.0
      %618 = vmatprep.subr.mxu0 0.0
      %619 = vmatpush1.msra.mxu0 0.0
      %620 = vmatprep.subr.mxu0 0.0
      %621 = vmatpush1.msra.mxu0 0.0
      %622 = vmatprep.mubr.f32.mxu0 0.0
      %623 = vmatmul.mubr.f32.gmra.mrb[0].mxu0 %v316
      %v624 = vpop.f32.mrb[0].mxu0
      %v625 = vadd.f32 %v550, %v624
      %v626 = vpop.f32.mrb[0].mxu0
      %627 = vmatprep.mubr.f32.mxu0 0.0
      %628 = vmatmul.mubr.f32.gmra.mrb[0].mxu0 %v321
      %v629 = vpop.f32.mrb[0].mxu0
      %v630 = vadd.f32 %v555, %v629
      %v631 = vpop.f32.mrb[0].mxu0
      %632 = vdwg.mxu0
      %vm633 = vcmask 818176
      %v634 = vsel %vm633, %v625, 0.0
      %635 = vadd.xlane.f32.xlu0 %v634
      %v636 = vpop.xlane.xlu0 %635
      %v637 = vsel %vm633, %v630, 0.0
      %638 = vadd.xlane.f32.xlu0 %v637
      %v639 = vpop.xlane.xlu0 %638
      %v640 = vmul.f32 %v636, 0.01
      %v641 = vmul.f32 %v639, 0.01
      %v642 = vsub.f32 %v625, %v640
      %v643 = vsub.f32 %v630, %v641
      %v644 = vmul.f32 %v642, %v642
      %v645 = vmul.f32 %v643, %v643
      %v646 = vsel %vm633, %v644, 0.0
      %647 = vadd.xlane.f32.xlu0 %v646
      %v648 = vpop.xlane.xlu0 %647
      %v649 = vsel %vm633, %v645, 0.0
      %650 = vadd.xlane.f32.xlu0 %v649
      %v651 = vpop.xlane.xlu0 %650
      %v652 = vmul.f32 %v648, 0.01
      %v653 = vmul.f32 %v651, 0.01
      %v654 = vadd.f32 %v652, 1e-05
      %v655 = vadd.f32 %v653, 1e-05
      %v656 = vrsqrt.pop %v654
      %v657 = vrsqrt.pop %v655
      %v658 = vmul.f32 %v642, %v656
      %v659 = vmul.f32 %v643, %v657
      %v660 = vlaneseq
      %v661 = vshrl.u32 %v660, 7
      %v662 = vsub.s32 1, %v661
      %v663 = vrot.slane %v322, %v662
      %v664 = vmul.f32 %v658, %v663
      %v665 = vmul.f32 %v659, %v663
      %v666 = vlaneseq
      %v667 = vshrl.u32 %v666, 7
      %v668 = vsub.s32 2, %v667
      %v669 = vrot.slane %v322, %v668
      %v670 = vadd.f32 %v664, %v669
      %v671 = vadd.f32 %v665, %v669
      %v672 = vmax.f32 %v670, 0.0
      %v673 = vmax.f32 %v671, 0.0
      %v674 = vld [vmem:[%s3] sm:$0xff]
      %v675 = vld [vmem:[%s3 + $0x8] sm:$0xff]
      %v676 = vld [vmem:[%s3 + $0x10] sm:$0xff]
      %v677 = vld [vmem:[%s3 + $0x18] sm:$0xff]
      %v678 = vld [vmem:[%s3 + $0x20] sm:$0xff]
      %v679 = vld [vmem:[%s3 + $0x28] sm:$0xff]
      %v680 = vld [vmem:[%s3 + $0x30] sm:$0xff]
      %v681 = vld [vmem:[%s3 + $0x38] sm:$0xff]
      %v682 = vld [vmem:[%s3 + $0x40] sm:$0xff]
      %v683 = vld [vmem:[%s3 + $0x48] sm:$0xff]
      %v684 = vld [vmem:[%s3 + $0x50] sm:$0xff]
      %v685 = vld [vmem:[%s3 + $0x58] sm:$0xff]
      %v686 = vld [vmem:[%s3 + $0x60] sm:$0xf]
      %v688 = vsel %vm633, %v672, 0
      %v691 = vsel %vm633, %v673, 0
      %vm693 = vcmask 1043456
      %v695 = vsel %vm693, %v686, 0
      %697 = vmatprep.subr.mxu0 0.0
      %698 = vmatpush1.msra.mxu0 %v674
      %699 = vmatprep.subr.mxu0 0.0
      %700 = vmatpush1.msra.mxu0 %v675
      %701 = vmatprep.subr.mxu0 0.0
      %702 = vmatpush1.msra.mxu0 %v676
      %703 = vmatprep.subr.mxu0 0.0
      %704 = vmatpush1.msra.mxu0 %v677
      %705 = vmatprep.subr.mxu0 0.0
      %706 = vmatpush1.msra.mxu0 %v678
      %707 = vmatprep.subr.mxu0 0.0
      %708 = vmatpush1.msra.mxu0 %v679
      %709 = vmatprep.subr.mxu0 0.0
      %710 = vmatpush1.msra.mxu0 %v680
      %711 = vmatprep.subr.mxu0 0.0
      %712 = vmatpush1.msra.mxu0 %v681
      %713 = vmatprep.subr.mxu0 0.0
      %714 = vmatpush1.msra.mxu0 %v682
      %715 = vmatprep.subr.mxu0 0.0
      %716 = vmatpush1.msra.mxu0 %v683
      %717 = vmatprep.subr.mxu0 0.0
      %718 = vmatpush1.msra.mxu0 %v684
      %719 = vmatprep.subr.mxu0 0.0
      %720 = vmatpush1.msra.mxu0 %v685
      %721 = vmatprep.subr.mxu0 0.0
      %722 = vmatpush1.msra.mxu0 %v695
      %723 = vmatprep.subr.mxu0 0.0
      %724 = vmatpush1.msra.mxu0 0.0
      %725 = vmatprep.subr.mxu0 0.0
      %726 = vmatpush1.msra.mxu0 0.0
      %727 = vmatprep.subr.mxu0 0.0
      %728 = vmatpush1.msra.mxu0 0.0
      %729 = vmatprep.subr.mxu0 0.0
      %730 = vmatpush1.msra.mxu0 0.0
      %731 = vmatprep.subr.mxu0 0.0
      %732 = vmatpush1.msra.mxu0 0.0
      %733 = vmatprep.subr.mxu0 0.0
      %734 = vmatpush1.msra.mxu0 0.0
      %735 = vmatprep.subr.mxu0 0.0
      %736 = vmatpush1.msra.mxu0 0.0
      %737 = vmatprep.subr.mxu0 0.0
      %738 = vmatpush1.msra.mxu0 0.0
      %739 = vmatprep.subr.mxu0 0.0
      %740 = vmatpush1.msra.mxu0 0.0
      %741 = vmatprep.subr.mxu0 0.0
      %742 = vmatpush1.msra.mxu0 0.0
      %743 = vmatprep.subr.mxu0 0.0
      %744 = vmatpush1.msra.mxu0 0.0
      %745 = vmatprep.subr.mxu0 0.0
      %746 = vmatpush1.msra.mxu0 0.0
      %747 = vmatprep.subr.mxu0 0.0
      %748 = vmatpush1.msra.mxu0 0.0
      %749 = vmatprep.subr.mxu0 0.0
      %750 = vmatpush1.msra.mxu0 0.0
      %751 = vmatprep.subr.mxu0 0.0
      %752 = vmatpush1.msra.mxu0 0.0
      %753 = vmatprep.subr.mxu0 0.0
      %754 = vmatpush1.msra.mxu0 0.0
      %755 = vmatprep.subr.mxu0 0.0
      %756 = vmatpush1.msra.mxu0 0.0
      %757 = vmatprep.subr.mxu0 0.0
      %758 = vmatpush1.msra.mxu0 0.0
      %759 = vmatprep.subr.mxu0 0.0
      %760 = vmatpush1.msra.mxu0 0.0
      %761 = vmatprep.mubr.f32.mxu0 0.0
      %762 = vmatmul.mubr.f32.gmra.mrb[0].mxu0 %v688
      %v763 = vpop.f32.mrb[0].mxu0
      %v764 = vadd.f32 0.0, %v763
      %v765 = vpop.f32.mrb[0].mxu0
      %766 = vmatprep.mubr.f32.mxu0 0.0
      %767 = vmatmul.mubr.f32.gmra.mrb[0].mxu0 %v691
      %v768 = vpop.f32.mrb[0].mxu0
      %v769 = vadd.f32 0.0, %v768
      %v770 = vpop.f32.mrb[0].mxu0
      %771 = vdwg.mxu0
      %vm772 = vcmask 130048
      %v773 = vsel %vm772, %v764, 0.0
      %774 = vadd.xlane.f32.xlu0 %v773
      %v775 = vpop.xlane.xlu0 %774
      %v776 = vsel %vm772, %v769, 0.0
      %777 = vadd.xlane.f32.xlu0 %v776
      %v778 = vpop.xlane.xlu0 %777
      %v779 = vmul.f32 %v775, 0.0625
      %v780 = vmul.f32 %v778, 0.0625
      %v781 = vsub.f32 %v764, %v779
      %v782 = vsub.f32 %v769, %v780
      %v783 = vmul.f32 %v781, %v781
      %v784 = vmul.f32 %v782, %v782
      %v785 = vsel %vm772, %v783, 0.0
      %786 = vadd.xlane.f32.xlu0 %v785
      %v787 = vpop.xlane.xlu0 %786
      %v788 = vsel %vm772, %v784, 0.0
      %789 = vadd.xlane.f32.xlu0 %v788
      %v790 = vpop.xlane.xlu0 %789
      %v791 = vmul.f32 %v787, 0.0625
      %v792 = vmul.f32 %v790, 0.0625
      %v793 = vadd.f32 %v791, 1e-05
      %v794 = vadd.f32 %v792, 1e-05
      %v795 = vrsqrt.pop %v793
      %v796 = vrsqrt.pop %v794
      %v797 = vmul.f32 %v781, %v795
      %v798 = vmul.f32 %v782, %v796
      %v799 = vlaneseq
      %v800 = vshrl.u32 %v799, 7
      %v801 = vsub.s32 0, %v800
      %v802 = vrot.slane %v323, %v801
      %v803 = vmul.f32 %v797, %v802
      %v804 = vmul.f32 %v798, %v802
      %v805 = vlaneseq
      %v806 = vshrl.u32 %v805, 7
      %v807 = vsub.s32 1, %v806
      %v808 = vrot.slane %v323, %v807
      %v809 = vadd.f32 %v803, %v808
      %v810 = vadd.f32 %v804, %v808
      %v811 = vmax.f32 %v809, 0.0
      %v812 = vmax.f32 %v810, 0.0
      %v813 = vld [vmem:[%s6] sm:$0xff]
      %v814 = vld [vmem:[%s6 + $0x8] sm:$0xff]
      %v816 = vsel %vm772, %v811, 0
      %v819 = vsel %vm772, %v812, 0
      %821 = vmatprep.subr.mxu0 0.0
      %822 = vmatpush1.msra.mxu0 %v813
      %823 = vmatprep.subr.mxu0 0.0
      %824 = vmatpush1.msra.mxu0 %v814
      %825 = vmatprep.subr.mxu0 0.0
      %826 = vmatpush1.msra.mxu0 0.0
      %827 = vmatprep.subr.mxu0 0.0
      %828 = vmatpush1.msra.mxu0 0.0
      %829 = vmatprep.subr.mxu0 0.0
      %830 = vmatpush1.msra.mxu0 0.0
      %831 = vmatprep.subr.mxu0 0.0
      %832 = vmatpush1.msra.mxu0 0.0
      %833 = vmatprep.subr.mxu0 0.0
      %834 = vmatpush1.msra.mxu0 0.0
      %835 = vmatprep.subr.mxu0 0.0
      %836 = vmatpush1.msra.mxu0 0.0
      %837 = vmatprep.subr.mxu0 0.0
      %838 = vmatpush1.msra.mxu0 0.0
      %839 = vmatprep.subr.mxu0 0.0
      %840 = vmatpush1.msra.mxu0 0.0
      %841 = vmatprep.subr.mxu0 0.0
      %842 = vmatpush1.msra.mxu0 0.0
      %843 = vmatprep.subr.mxu0 0.0
      %844 = vmatpush1.msra.mxu0 0.0
      %845 = vmatprep.subr.mxu0 0.0
      %846 = vmatpush1.msra.mxu0 0.0
      %847 = vmatprep.subr.mxu0 0.0
      %848 = vmatpush1.msra.mxu0 0.0
      %849 = vmatprep.subr.mxu0 0.0
      %850 = vmatpush1.msra.mxu0 0.0
      %851 = vmatprep.subr.mxu0 0.0
      %852 = vmatpush1.msra.mxu0 0.0
      %853 = vmatprep.subr.mxu0 0.0
      %854 = vmatpush1.msra.mxu0 0.0
      %855 = vmatprep.subr.mxu0 0.0
      %856 = vmatpush1.msra.mxu0 0.0
      %857 = vmatprep.subr.mxu0 0.0
      %858 = vmatpush1.msra.mxu0 0.0
      %859 = vmatprep.subr.mxu0 0.0
      %860 = vmatpush1.msra.mxu0 0.0
      %861 = vmatprep.subr.mxu0 0.0
      %862 = vmatpush1.msra.mxu0 0.0
      %863 = vmatprep.subr.mxu0 0.0
      %864 = vmatpush1.msra.mxu0 0.0
      %865 = vmatprep.subr.mxu0 0.0
      %866 = vmatpush1.msra.mxu0 0.0
      %867 = vmatprep.subr.mxu0 0.0
      %868 = vmatpush1.msra.mxu0 0.0
      %869 = vmatprep.subr.mxu0 0.0
      %870 = vmatpush1.msra.mxu0 0.0
      %871 = vmatprep.subr.mxu0 0.0
      %872 = vmatpush1.msra.mxu0 0.0
      %873 = vmatprep.subr.mxu0 0.0
      %874 = vmatpush1.msra.mxu0 0.0
      %875 = vmatprep.subr.mxu0 0.0
      %876 = vmatpush1.msra.mxu0 0.0
      %877 = vmatprep.subr.mxu0 0.0
      %878 = vmatpush1.msra.mxu0 0.0
      %879 = vmatprep.subr.mxu0 0.0
      %880 = vmatpush1.msra.mxu0 0.0
      %881 = vmatprep.subr.mxu0 0.0
      %882 = vmatpush1.msra.mxu0 0.0
      %883 = vmatprep.subr.mxu0 0.0
      %884 = vmatpush1.msra.mxu0 0.0
      %885 = vmatprep.mubr.f32.mxu0 0.0
      %886 = vmatmul.mubr.f32.gmra.mrb[0].mxu0 %v816
      %v887 = vpop.f32.mrb[0].mxu0
      %v888 = vadd.f32 0.0, %v887
      %v889 = vpop.f32.mrb[0].mxu0
      %890 = vmatprep.mubr.f32.mxu0 0.0
      %891 = vmatmul.mubr.f32.gmra.mrb[0].mxu0 %v819
      %v892 = vpop.f32.mrb[0].mxu0
      %v893 = vadd.f32 0.0, %v892
      %v894 = vpop.f32.mrb[0].mxu0
      %895 = vdwg.mxu0
      %vm896 = vcmask 64512
      %v897 = vsel %vm896, %v888, 0.0
      %898 = vadd.xlane.f32.xlu0 %v897
      %v899 = vpop.xlane.xlu0 %898
      %v900 = vsel %vm896, %v893, 0.0
      %901 = vadd.xlane.f32.xlu0 %v900
      %v902 = vpop.xlane.xlu0 %901
      %v903 = vmul.f32 %v899, 0.125
      %v904 = vmul.f32 %v902, 0.125
      %v905 = vsub.f32 %v888, %v903
      %v906 = vsub.f32 %v893, %v904
      %v907 = vmul.f32 %v905, %v905
      %v908 = vmul.f32 %v906, %v906
      %v909 = vsel %vm896, %v907, 0.0
      %910 = vadd.xlane.f32.xlu0 %v909
      %v911 = vpop.xlane.xlu0 %910
      %v912 = vsel %vm896, %v908, 0.0
      %913 = vadd.xlane.f32.xlu0 %v912
      %v914 = vpop.xlane.xlu0 %913
      %v915 = vmul.f32 %v911, 0.125
      %v916 = vmul.f32 %v914, 0.125
      %v917 = vadd.f32 %v915, 1e-05
      %v918 = vadd.f32 %v916, 1e-05
      %v919 = vrsqrt.pop %v917
      %v920 = vrsqrt.pop %v918
      %v921 = vmul.f32 %v905, %v919
      %v922 = vmul.f32 %v906, %v920
      %v923 = vlaneseq
      %v924 = vshrl.u32 %v923, 7
      %v925 = vsub.s32 2, %v924
      %v926 = vrot.slane %v323, %v925
      %v927 = vmul.f32 %v921, %v926
      %v928 = vmul.f32 %v922, %v926
      %v929 = vlaneseq
      %v930 = vshrl.u32 %v929, 7
      %v931 = vsub.s32 3, %v930
      %v932 = vrot.slane %v323, %v931
      %v933 = vadd.f32 %v927, %v932
      %v934 = vadd.f32 %v928, %v932
      %v935 = vmax.f32 %v933, 0.0
      %v936 = vmax.f32 %v934, 0.0
      %v937 = vld [vmem:[%s7] sm:$0xff]
      %v938 = vlaneseq
      %v939 = vshrl.u32 %v938, 7
      %v940 = vsub.s32 3, %v939
      %v941 = vrot.slane %v322, %v940
      %v942 = vmul.f32 %v658, %v941
      %v943 = vmul.f32 %v659, %v941
      %v944 = vlaneseq
      %v945 = vshrl.u32 %v944, 7
      %v946 = vsub.s32 4, %v945
      %v947 = vrot.slane %v322, %v946
      %v948 = vadd.f32 %v942, %v947
      %v949 = vadd.f32 %v943, %v947
      %v950 = vld [vmem:[%s4] sm:$0xff]
      %v951 = vld [vmem:[%s4 + $0x8] sm:$0xff]
      %v952 = vld [vmem:[%s4 + $0x10] sm:$0xff]
      %v953 = vld [vmem:[%s4 + $0x18] sm:$0xff]
      %v954 = vld [vmem:[%s4 + $0x20] sm:$0xff]
      %v955 = vld [vmem:[%s4 + $0x28] sm:$0xff]
      %v956 = vld [vmem:[%s4 + $0x30] sm:$0xff]
      %v957 = vld [vmem:[%s4 + $0x38] sm:$0xff]
      %v958 = vld [vmem:[%s4 + $0x40] sm:$0xff]
      %v959 = vld [vmem:[%s4 + $0x48] sm:$0xff]
      %v960 = vld [vmem:[%s4 + $0x50] sm:$0xff]
      %v961 = vld [vmem:[%s4 + $0x58] sm:$0xff]
      %v962 = vld [vmem:[%s4 + $0x60] sm:$0xf]
      %v964 = vsel %vm633, %v948, 0
      %v967 = vsel %vm633, %v949, 0
      %v970 = vsel %vm693, %v962, 0
      %972 = vmatprep.subr.mxu0 0.0
      %973 = vmatpush1.msra.mxu0 %v950
      %974 = vmatprep.subr.mxu0 0.0
      %975 = vmatpush1.msra.mxu0 %v951
      %976 = vmatprep.subr.mxu0 0.0
      %977 = vmatpush1.msra.mxu0 %v952
      %978 = vmatprep.subr.mxu0 0.0
      %979 = vmatpush1.msra.mxu0 %v953
      %980 = vmatprep.subr.mxu0 0.0
      %981 = vmatpush1.msra.mxu0 %v954
      %982 = vmatprep.subr.mxu0 0.0
      %983 = vmatpush1.msra.mxu0 %v955
      %984 = vmatprep.subr.mxu0 0.0
      %985 = vmatpush1.msra.mxu0 %v956
      %986 = vmatprep.subr.mxu0 0.0
      %987 = vmatpush1.msra.mxu0 %v957
      %988 = vmatprep.subr.mxu0 0.0
      %989 = vmatpush1.msra.mxu0 %v958
      %990 = vmatprep.subr.mxu0 0.0
      %991 = vmatpush1.msra.mxu0 %v959
      %992 = vmatprep.subr.mxu0 0.0
      %993 = vmatpush1.msra.mxu0 %v960
      %994 = vmatprep.subr.mxu0 0.0
      %995 = vmatpush1.msra.mxu0 %v961
      %996 = vmatprep.subr.mxu0 0.0
      %997 = vmatpush1.msra.mxu0 %v970
      %998 = vmatprep.subr.mxu0 0.0
      %999 = vmatpush1.msra.mxu0 0.0
      %1000 = vmatprep.subr.mxu0 0.0
      %1001 = vmatpush1.msra.mxu0 0.0
      %1002 = vmatprep.subr.mxu0 0.0
      %1003 = vmatpush1.msra.mxu0 0.0
      %1004 = vmatprep.subr.mxu0 0.0
      %1005 = vmatpush1.msra.mxu0 0.0
      %1006 = vmatprep.subr.mxu0 0.0
      %1007 = vmatpush1.msra.mxu0 0.0
      %1008 = vmatprep.subr.mxu0 0.0
      %1009 = vmatpush1.msra.mxu0 0.0
      %1010 = vmatprep.subr.mxu0 0.0
      %1011 = vmatpush1.msra.mxu0 0.0
      %1012 = vmatprep.subr.mxu0 0.0
      %1013 = vmatpush1.msra.mxu0 0.0
      %1014 = vmatprep.subr.mxu0 0.0
      %1015 = vmatpush1.msra.mxu0 0.0
      %1016 = vmatprep.subr.mxu0 0.0
      %1017 = vmatpush1.msra.mxu0 0.0
      %1018 = vmatprep.subr.mxu0 0.0
      %1019 = vmatpush1.msra.mxu0 0.0
      %1020 = vmatprep.subr.mxu0 0.0
      %1021 = vmatpush1.msra.mxu0 0.0
      %1022 = vmatprep.subr.mxu0 0.0
      %1023 = vmatpush1.msra.mxu0 0.0
      %1024 = vmatprep.subr.mxu0 0.0
      %1025 = vmatpush1.msra.mxu0 0.0
      %1026 = vmatprep.subr.mxu0 0.0
      %1027 = vmatpush1.msra.mxu0 0.0
      %1028 = vmatprep.subr.mxu0 0.0
      %1029 = vmatpush1.msra.mxu0 0.0
      %1030 = vmatprep.subr.mxu0 0.0
      %1031 = vmatpush1.msra.mxu0 0.0
      %1032 = vmatprep.subr.mxu0 0.0
      %1033 = vmatpush1.msra.mxu0 0.0
      %1034 = vmatprep.subr.mxu0 0.0
      %1035 = vmatpush1.msra.mxu0 0.0
      %1036 = vmatprep.mubr.f32.mxu0 0.0
      %1037 = vmatmul.mubr.f32.gmra.mrb[0].mxu0 %v964
      %v1038 = vpop.f32.mrb[0].mxu0
      %v1039 = vadd.f32 0.0, %v1038
      %v1040 = vpop.f32.mrb[0].mxu0
      %1041 = vmatprep.mubr.f32.mxu0 0.0
      %1042 = vmatmul.mubr.f32.gmra.mrb[0].mxu0 %v967
      %v1043 = vpop.f32.mrb[0].mxu0
      %v1044 = vadd.f32 0.0, %v1043
      %v1045 = vpop.f32.mrb[0].mxu0
      %1046 = vdwg.mxu0
      %v1048 = vsel %vm896, %v935, 0
      %v1051 = vsel %vm896, %v936, 0
      %1053 = vmatprep.subr.mxu0 0.0
      %1054 = vmatpush1.msra.mxu0 %v937
      %1055 = vmatprep.subr.mxu0 0.0
      %1056 = vmatpush1.msra.mxu0 0.0
      %1057 = vmatprep.subr.mxu0 0.0
      %1058 = vmatpush1.msra.mxu0 0.0
      %1059 = vmatprep.subr.mxu0 0.0
      %1060 = vmatpush1.msra.mxu0 0.0
      %1061 = vmatprep.subr.mxu0 0.0
      %1062 = vmatpush1.msra.mxu0 0.0
      %1063 = vmatprep.subr.mxu0 0.0
      %1064 = vmatpush1.msra.mxu0 0.0
      %1065 = vmatprep.subr.mxu0 0.0
      %1066 = vmatpush1.msra.mxu0 0.0
      %1067 = vmatprep.subr.mxu0 0.0
      %1068 = vmatpush1.msra.mxu0 0.0
      %1069 = vmatprep.subr.mxu0 0.0
      %1070 = vmatpush1.msra.mxu0 0.0
      %1071 = vmatprep.subr.mxu0 0.0
      %1072 = vmatpush1.msra.mxu0 0.0
      %1073 = vmatprep.subr.mxu0 0.0
      %1074 = vmatpush1.msra.mxu0 0.0
      %1075 = vmatprep.subr.mxu0 0.0
      %1076 = vmatpush1.msra.mxu0 0.0
      %1077 = vmatprep.subr.mxu0 0.0
      %1078 = vmatpush1.msra.mxu0 0.0
      %1079 = vmatprep.subr.mxu0 0.0
      %1080 = vmatpush1.msra.mxu0 0.0
      %1081 = vmatprep.subr.mxu0 0.0
      %1082 = vmatpush1.msra.mxu0 0.0
      %1083 = vmatprep.subr.mxu0 0.0
      %1084 = vmatpush1.msra.mxu0 0.0
      %1085 = vmatprep.subr.mxu0 0.0
      %1086 = vmatpush1.msra.mxu0 0.0
      %1087 = vmatprep.subr.mxu0 0.0
      %1088 = vmatpush1.msra.mxu0 0.0
      %1089 = vmatprep.subr.mxu0 0.0
      %1090 = vmatpush1.msra.mxu0 0.0
      %1091 = vmatprep.subr.mxu0 0.0
      %1092 = vmatpush1.msra.mxu0 0.0
      %1093 = vmatprep.subr.mxu0 0.0
      %1094 = vmatpush1.msra.mxu0 0.0
      %1095 = vmatprep.subr.mxu0 0.0
      %1096 = vmatpush1.msra.mxu0 0.0
      %1097 = vmatprep.subr.mxu0 0.0
      %1098 = vmatpush1.msra.mxu0 0.0
      %1099 = vmatprep.subr.mxu0 0.0
      %1100 = vmatpush1.msra.mxu0 0.0
      %1101 = vmatprep.subr.mxu0 0.0
      %1102 = vmatpush1.msra.mxu0 0.0
      %1103 = vmatprep.subr.mxu0 0.0
      %1104 = vmatpush1.msra.mxu0 0.0
      %1105 = vmatprep.subr.mxu0 0.0
      %1106 = vmatpush1.msra.mxu0 0.0
      %1107 = vmatprep.subr.mxu0 0.0
      %1108 = vmatpush1.msra.mxu0 0.0
      %1109 = vmatprep.subr.mxu0 0.0
      %1110 = vmatpush1.msra.mxu0 0.0
      %1111 = vmatprep.subr.mxu0 0.0
      %1112 = vmatpush1.msra.mxu0 0.0
      %1113 = vmatprep.subr.mxu0 0.0
      %1114 = vmatpush1.msra.mxu0 0.0
      %1115 = vmatprep.subr.mxu0 0.0
      %1116 = vmatpush1.msra.mxu0 0.0
      %1117 = vmatprep.mubr.f32.mxu0 0.0
      %1118 = vmatmul.mubr.f32.gmra.mrb[0].mxu0 %v1048
      %v1119 = vpop.f32.mrb[0].mxu0
      %v1120 = vadd.f32 %v1039, %v1119
      %v1121 = vpop.f32.mrb[0].mxu0
      %1122 = vmatprep.mubr.f32.mxu0 0.0
      %1123 = vmatmul.mubr.f32.gmra.mrb[0].mxu0 %v1051
      %v1124 = vpop.f32.mrb[0].mxu0
      %v1125 = vadd.f32 %v1044, %v1124
      %v1126 = vpop.f32.mrb[0].mxu0
      %1127 = vdwg.mxu0
      %vm1128 = vcmask 15360
      %1129 = vst.msk [vmem:[%s310] sm:$0xff] %vm1128, %v1120
      %1130 = vst.msk [vmem:[%s310 + $0x8] sm:$0xff] %vm1128, %v1125
      %s1131 = smul.u32 2, %s19
      %p1132 = scmp.lt.s32.totalorder %s1131, 3
      %s1133 = scalar_select %p1132, %s1131, 3
      %s1134 = smul.addr %s1133, 8
      %s1135 = scalar_lea.vmem %s8, %s1134
      // Predicated region
      $region53: #{tpu_custom_call.1} parent=51 // pred_check
        %p1136 = pneg %p210
      $region54: #{tpu_custom_call.1} parent=51 // pred_check_branch
        %1138 = sbr.rel (%p1136) target = $region56
      $region55: #{tpu_custom_call.1} parent=51 // pred_region
        %s1139 = smul.u32 2, %s19
      $region56: #{tpu_custom_call.1} parent=51 // pred_fallthru
        _
    $region52: #{tpu_custom_call.1} parent=5 // pred_fallthru
      _
    %p1140 = scmp.le.s32.totalorder 2, %s14
    // Predicated region
    $region57: #{tpu_custom_call.1} parent=5 // pred_check
      %p1141 = pneg %p1140
    $region58: #{tpu_custom_call.1} parent=5 // pred_check_branch
      %1143 = sbr.rel (%p1141) target = $region60
    $region59: #{tpu_custom_call.1} parent=5 // pred_region
      %s1144 = ssub.s32 %s14, 2
      // Predicated region
      $region61: #{tpu_custom_call.1} parent=59 // pred_check
        %p1145 = pneg %p216
      $region62: #{tpu_custom_call.1} parent=59 // pred_check_branch
        %1147 = sbr.rel (%p1145) target = $region64
      $region63: #{tpu_custom_call.1} parent=59 // pred_region
        %s1148 = smul.u32 2, %s20
        %p1149 = scmp.lt.s32.totalorder %s1148, 3
        %s1150 = scalar_select %p1149, %s1148, 3
        %s1151 = smul.addr %s1150, 8
        %s1152 = scalar_lea.vmem %s8, %s1151
      $region64: #{tpu_custom_call.1} parent=59 // pred_fallthru
        _
    $region60: #{tpu_custom_call.1} parent=5 // pred_fallthru
      _
  $region6: #{tpu_custom_call.1} parent=0 // loop_footer
    %s18 = sadd.s32 1, %s14
  $region7: #{tpu_custom_call.1} parent=0 // loop_footer_branch
    %13 = sbr.rel target = $region3
  $region8: #{tpu_custom_call.1} parent=0 // loop_exit
    _

</llo_original>
